<compile_context>
chip_gen: v6e
topology: v6e:2x2x1
jax: 0.10.0
libtpu: 0.0.40
codegen_flags: <defaults>
</compile_context>

<pallas_src>
import functools

import jax
import jax.numpy as jnp
import numpy as np
from jax import lax
from jax.experimental import pallas as pl
from jax.experimental.pallas import tpu as pltpu

C_IN = 768           # backbone_out_channels
C_FEAT = 48          # conv output channels
C_POS = 16           # positional encoding dim
C_QK = C_FEAT + C_POS    # 64
C_HID = 64           # classifier hidden dim
NUM_CLASSES = 21
TARGET_WIDTH = 40


# ----------------------------------------------------------------------------
# Pallas kernel: everything after the backbone, for one batch block.
# ----------------------------------------------------------------------------
def _semantic_kernel(
    feat_ref,        # (B, C_IN, HW) f32  channels-first, pixel p = h*fW + w
    wconv_bn_t_ref,  # (48, C_IN)    bf16 conv weight^T with BN scale folded in
    bnbias_ref,      # (48, 1)       f32  folded BN bias
    wkv_t_ref,       # (96, 48)      bf16 fused [wk_f | wv_f]^T
    wq_f_ref,        # (48, 48)      bf16
    avg_ref,         # (HW, fW)      f32  H-averaging matrix (MXU offload)
    kv_pos_ref,      # (96, HW)      f32  hoisted positional K/V contribution
    q_pos_ref,       # (fW, 48)      f32  hoisted positional Q contribution
    cls_w1_ref, cls_b1_ref,    # (48, 64), (1, 64)       f32
    cls_w2p_ref, cls_b2p_ref,  # (64, C_PAD), (1, C_PAD) f32, lane-padded
    logits_ref,      # (B, fW, C_PAD)
    attn_ref,        # (B, fW, HW)
    prob_ref,        # (B, fW, C_PAD)
    *, b_blk,
):
  f32 = jnp.float32
  bf16 = jnp.bfloat16
  inv_sqrt_d = 1.0 / (float(C_FEAT) ** 0.5)

  for b in range(b_blk):  # static unroll over the batch block
    # f32 -> bf16 cast in VMEM (no extra HBM pass in the wrapper)
    feat = feat_ref[b].astype(bf16)                                 # (C_IN, HW)

    # --- 1x1 conv (BN scale pre-folded) + bias + ReLU ---
    xf = jnp.dot(wconv_bn_t_ref[...], feat, preferred_element_type=f32)
    xf = jnp.maximum(xf + bnbias_ref[...], 0.0)                     # (48, HW)
    xf_b = xf.astype(bf16)

    # --- query = mean over H, as an MXU matmul (keeps XLU/VPU free) ---
    q_cf = jnp.dot(xf, avg_ref[...], preferred_element_type=f32)    # (48, fW)
    query = jnp.transpose(q_cf)                                     # (fW, 48)

    # --- fused K/V feature projection + hoisted positional bias ---
    kv = (jnp.dot(wkv_t_ref[...], xf_b, preferred_element_type=f32)
          + kv_pos_ref[...])                                        # (96, HW)
    k_cf = kv[0:C_FEAT, :]                                          # (48, HW) = K^T
    v_cf = kv[C_FEAT:2 * C_FEAT, :]                                 # (48, HW) = V^T

    # --- Q projection + hoisted positional bias ---
    q = (jnp.dot(query.astype(bf16), wq_f_ref[...],
                 preferred_element_type=f32) + q_pos_ref[...])      # (fW, 48)

    # --- single-head scaled dot-product attention ---
    scores = jnp.dot(q, k_cf, preferred_element_type=f32) * inv_sqrt_d
    m = jnp.max(scores, axis=-1, keepdims=True)
    e = jnp.exp(scores - m)
    attn = e * pl.reciprocal(jnp.sum(e, axis=-1, keepdims=True), approx=True)
    # TODO(synk): verify via pl.lower_as_mlir whether this NT-form dot forces a
    # vxpose of the HW-wide v_cf tile; restructure if confirmed.
    x_out = lax.dot_general(attn, v_cf, (((1,), (1,)), ((), ())),
                            preferred_element_type=f32)             # (fW, 48)

    # --- classifier head: Linear(48,64)+ReLU, Linear(64,C_PAD), softmax ---
    # (second layer lane-padded to C_PAD; padded bias = -1e30 so padded lanes
    #  contribute exp(...)=0 to the softmax and are sliced off in the wrapper)
    hidden = jnp.maximum(
        jnp.dot(x_out, cls_w1_ref[...], preferred_element_type=f32)
        + cls_b1_ref[...], 0.0)                                     # (fW, 64)
    logits = (jnp.dot(hidden, cls_w2p_ref[...], preferred_element_type=f32)
              + cls_b2p_ref[...])                                   # (fW, C_PAD)
    lm = jnp.max(logits, axis=-1, keepdims=True)
    le = jnp.exp(logits - lm)
    prob = le * pl.reciprocal(jnp.sum(le, axis=-1, keepdims=True), approx=True)

    logits_ref[b] = logits
    attn_ref[b] = attn
    prob_ref[b] = prob


# ----------------------------------------------------------------------------
# Wrapper: constant positional math, weight packing, pallas_call, upsample.
# ----------------------------------------------------------------------------
def _device_vmem_capacity():
  try:
    return int(pltpu.get_tpu_info().vmem_capacity_bytes)
  except Exception:
    return 64 << 20   # conservative fallback (v7x per-core capacity)


def semantic_net_forward(encoder_feature, params, target_width=TARGET_WIDTH):
  """encoder_feature: (N, 768, fH, fW) f32. Returns (logits, attn_w, prob)."""
  N, cin, fH, fW = encoder_feature.shape
  assert cin == C_IN
  HW = fH * fW
  num_classes = params["cls_w2"].shape[1]
  c_pad = ((num_classes + 127) // 128) * 128   # lane-dense classifier width

  # Channels-first layout kept as-is and in f32: trailing-dim merge is a free
  # reshape; the bf16 cast happens inside the kernel (VMEM), so the dominant
  # feature tensor is read from HBM exactly once (4 B/elem), never re-written.
  feat = encoder_feature.reshape(N, cin, HW)

  # --- batch-independent positional encodings (hoisted; match torch, incl.
  #     the (w,h)-major 2D grid construction of the original module) ---
  pos_x = jnp.linspace(0.0, 1.0, fW) - 0.5
  pos_y = jnp.linspace(0.0, 1.0, fH) - 0.5
  gx, gy = jnp.meshgrid(pos_x, pos_y, indexing="ij")                # (fW, fH)
  pos_grid_2d = jnp.stack([gx, gy], axis=-1).reshape(-1, 2)         # (HW, 2)
  pe2 = jnp.tanh(jnp.tanh(pos_grid_2d @ params["w1_2d"] + params["b1_2d"])
                 @ params["w2_2d"] + params["b2_2d"])               # (HW, 16)
  pos_v = (jnp.linspace(0.0, 1.0, fW) - 0.5).reshape(fW, 1)
  pe1 = jnp.tanh(jnp.tanh(pos_v @ params["w1_1d"] + params["b1_1d"])
                 @ params["w2_1d"] + params["b2_1d"])               # (fW, 16)

  # Split the 64-wide projections into feature / positional parts and hoist
  # the positional part (pos @ W_p) out of the kernel entirely.
  wq_f, wq_p = params["wq"][:C_FEAT], params["wq"][C_FEAT:]
  wk_f, wk_p = params["wk"][:C_FEAT], params["wk"][C_FEAT:]
  wv_f, wv_p = params["wv"][:C_FEAT], params["wv"][C_FEAT:]
  q_pos = (pe1 @ wq_p).astype(jnp.float32)                          # (fW, 48)
  kv_pos = jnp.concatenate([pe2 @ wk_p, pe2 @ wv_p],
                           axis=1).T.astype(jnp.float32)            # (96, HW)

  # BN scale folded into the conv weight (eval-mode affine), bias kept.
  wconv_bn_t = (params["wconv"] * params["bnscale"][None, :]).T.astype(jnp.bfloat16)
  bnbias = params["bnbias"].reshape(C_FEAT, 1).astype(jnp.float32)

  wkv_t = jnp.concatenate([wk_f, wv_f], axis=1).T.astype(jnp.bfloat16)  # (96, 48)
  wq_fb = wq_f.astype(jnp.bfloat16)                                     # (48, 48)

  # H-averaging matrix: S[h*fW + w, w] = 1/fH  ->  xf @ S == mean over H.
  avg = jnp.tile(jnp.eye(fW, dtype=jnp.float32), (fH, 1)) / float(fH)   # (HW, fW)

  cls_w1 = params["cls_w1"].astype(jnp.float32)
  cls_b1 = params["cls_b1"].astype(jnp.float32)
  cls_w2p = jnp.zeros((C_HID, c_pad), jnp.float32).at[:, :num_classes].set(
      params["cls_w2"].astype(jnp.float32))
  cls_b2p = jnp.full((1, c_pad), -1e30, jnp.float32).at[:, :num_classes].set(
      params["cls_b2"].astype(jnp.float32))

  const_args = [wconv_bn_t, bnbias, wkv_t, wq_fb, avg, kv_pos, q_pos,
                cls_w1, cls_b1, cls_w2p, cls_b2p]
  const_bytes = sum(int(np.prod(a.shape)) * a.dtype.itemsize for a in const_args)

  # --- device-aware VMEM budget + batch-block selection ---
  vmem_cap = _device_vmem_capacity()
  per_sample_io = cin * HW * 4 + fW * (HW + 2 * c_pad) * 4     # feat + outputs
  per_sample_tmp = HW * 1024 + fW * HW * 8 + fW * 2048         # body temporaries

  def vmem_need(b):
    # double-buffered I/O blocks + constants + temporaries + compiler headroom
    return 2 * b * per_sample_io + b * per_sample_tmp + const_bytes + (12 << 20)

  b_blk = 1
  for b in range(1, min(8, N) + 1):
    if N % b != 0:
      continue
    if N >= 2 and N // b < 2:
      continue   # keep >= 2 grid steps so v7x's 2 TensorCores both stay busy
    if vmem_need(b) <= vmem_cap - (8 << 20):
      b_blk = b
  grid_len = N // b_blk
  vmem_bytes = int(min(vmem_need(b_blk), vmem_cap))

  def rep(a):
    shape = a.shape
    return pl.BlockSpec(shape, lambda n: (0,) * len(shape))

  in_specs = ([pl.BlockSpec((b_blk, cin, HW), lambda n: (n, 0, 0))]
              + [rep(a) for a in const_args])
  out_specs = [
      pl.BlockSpec((b_blk, fW, c_pad), lambda n: (n, 0, 0)),
      pl.BlockSpec((b_blk, fW, HW), lambda n: (n, 0, 0)),
      pl.BlockSpec((b_blk, fW, c_pad), lambda n: (n, 0, 0)),
  ]
  out_shape = (
      jax.ShapeDtypeStruct((N, fW, c_pad), jnp.float32),
      jax.ShapeDtypeStruct((N, fW, HW), jnp.float32),
      jax.ShapeDtypeStruct((N, fW, c_pad), jnp.float32),
  )

  logits_p, attn_w, prob_p = pl.pallas_call(
      functools.partial(_semantic_kernel, b_blk=b_blk),
      out_shape=out_shape,
      grid_spec=pltpu.PrefetchScalarGridSpec(
          num_scalar_prefetch=0,
          grid=(grid_len,),
          in_specs=in_specs,
          out_specs=out_specs,
      ),
      compiler_params=pltpu.CompilerParams(
          dimension_semantics=("parallel",),
          vmem_limit_bytes=vmem_bytes),
  )(feat, *const_args)

  # slice the lane padding back off
  logits_s = logits_p[:, :, :num_classes]
  prob_s = prob_p[:, :, :num_classes]

  # nearest upsample along the "width" dim to target_width (row gather);
  # the classifier is row-wise, so classifying before upsampling is identical.
  if fW != target_width:
    idx = (jnp.arange(target_width) * fW) // target_width
    logits = jnp.take(logits_s, idx, axis=1)
    prob = jnp.take(prob_s, idx, axis=1)
  else:
    logits, prob = logits_s, prob_s
  return logits, attn_w, prob


# ----------------------------------------------------------------------------
# Deterministic synthetic parameters (shapes from the module's __init__)
# ----------------------------------------------------------------------------
def init_params(key):
  ks = jax.random.split(key, 24)
  f32 = jnp.float32

  wconv = jax.random.normal(ks[0], (C_IN, C_FEAT), f32) * 0.02   # 1x1 conv, no bias

  # BatchNorm2d(48), eval-mode folding with synthetic running stats
  gamma = 1.0 + 0.1 * jax.random.normal(ks[1], (C_FEAT,), f32)
  beta = 0.1 * jax.random.normal(ks[2], (C_FEAT,), f32)
  r_mean = 0.1 * jax.random.normal(ks[3], (C_FEAT,), f32)
  r_var = jnp.abs(1.0 + 0.1 * jax.random.normal(ks[4], (C_FEAT,), f32))
  inv_std = gamma / jnp.sqrt(r_var + 1e-5)
  bnscale = inv_std
  bnbias = beta - r_mean * inv_std

  def lin(k, fan_in, fan_out):
    bound = 1.0 / (fan_in ** 0.5)
    return jax.random.uniform(k, (fan_in, fan_out), f32, -bound, bound)

  return dict(
      wconv=wconv, bnscale=bnscale, bnbias=bnbias,
      # pos_mlp_2d: Linear(2,16), Tanh, Linear(16,16), Tanh
      w1_2d=lin(ks[5], 2, C_POS), b1_2d=lin(ks[6], 2, C_POS)[:1],
      w2_2d=lin(ks[7], C_POS, C_POS), b2_2d=lin(ks[8], C_POS, C_POS)[:1],
      # pos_mlp_1d: Linear(1,16), Tanh, Linear(16,16), Tanh
      w1_1d=lin(ks[9], 1, C_POS), b1_1d=lin(ks[10], 1, C_POS)[:1],
      w2_1d=lin(ks[11], C_POS, C_POS), b2_1d=lin(ks[12], C_POS, C_POS)[:1],
      # q/k/v projections: Linear(64, 48, bias=False), stored as (in, out)
      wq=lin(ks[13], C_QK, C_FEAT),
      wk=lin(ks[14], C_QK, C_FEAT),
      wv=lin(ks[15], C_QK, C_FEAT),
      # classifier: Linear(48,64)+ReLU, Linear(64,num_classes)
      cls_w1=lin(ks[16], C_FEAT, C_HID), cls_b1=lin(ks[17], C_FEAT, C_HID)[:1],
      cls_w2=lin(ks[18], C_HID, NUM_CLASSES), cls_b2=lin(ks[19], C_HID, NUM_CLASSES)[:1],
  )


# ----------------------------------------------------------------------------
# Pure-JAX reference (mirrors the PyTorch forward, incl. concat + classifier)
# ----------------------------------------------------------------------------
def reference_forward(encoder_feature, params, target_width=TARGET_WIDTH):
  N, cin, fH, fW = encoder_feature.shape
  HW = fH * fW
  xf = jnp.einsum("nchw,co->nohw", encoder_feature, params["wconv"])
  xf = (xf * params["bnscale"].reshape(1, -1, 1, 1)
        + params["bnbias"].reshape(1, -1, 1, 1))
  xf = jnp.maximum(xf, 0.0)                                     # (N,48,fH,fW)
  query = jnp.transpose(xf.mean(axis=2), (0, 2, 1))             # (N,fW,48)
  x_flat = jnp.transpose(xf.reshape(N, C_FEAT, HW), (0, 2, 1))  # (N,HW,48)

  pos_x = jnp.linspace(0.0, 1.0, fW) - 0.5
  pos_y = jnp.linspace(0.0, 1.0, fH) - 0.5
  gx, gy = jnp.meshgrid(pos_x, pos_y, indexing="ij")
  pos_grid_2d = jnp.stack([gx, gy], axis=-1).reshape(-1, 2)
  pe2 = jnp.tanh(jnp.tanh(pos_grid_2d @ params["w1_2d"] + params["b1_2d"])
                 @ params["w2_2d"] + params["b2_2d"])
  pos_v = (jnp.linspace(0.0, 1.0, fW) - 0.5).reshape(fW, 1)
  pe1 = jnp.tanh(jnp.tanh(pos_v @ params["w1_1d"] + params["b1_1d"])
                 @ params["w2_1d"] + params["b2_1d"])

  x_cat = jnp.concatenate([x_flat, jnp.broadcast_to(pe2, (N, HW, C_POS))], -1)
  q_cat = jnp.concatenate([query, jnp.broadcast_to(pe1, (N, fW, C_POS))], -1)
  Q = q_cat @ params["wq"]
  K = x_cat @ params["wk"]
  V = x_cat @ params["wv"]
  scores = jnp.einsum("nqd,nkd->nqk", Q, K) / (C_FEAT ** 0.5)
  attn = jax.nn.softmax(scores, axis=-1)
  x_out = jnp.einsum("nqk,nkd->nqd", attn, V)
  if fW != target_width:
    idx = (jnp.arange(target_width) * fW) // target_width
    x_out = jnp.take(x_out, idx, axis=1)
  hidden = jnp.maximum(x_out @ params["cls_w1"] + params["cls_b1"], 0.0)
  logits = hidden @ params["cls_w2"] + params["cls_b2"]
  prob = jax.nn.softmax(logits, axis=-1)
  return logits, attn, prob


if __name__ == "__main__":
  key = jax.random.PRNGKey(0)
  k_feat, k_param = jax.random.split(key)

  # Small synthetic "encoder_last_hidden_state": (N, 768, fH, fW)
  N, fH, fW = 2, 8, 8
  encoder_feature = jax.random.normal(k_feat, (N, C_IN, fH, fW), jnp.float32)
  params = init_params(k_param)

  logits, attn_w, prob = semantic_net_forward(encoder_feature, params)
  jax.block_until_ready((logits, attn_w, prob))

  ref_logits, ref_attn, ref_prob = reference_forward(encoder_feature, params)
  np.testing.assert_allclose(np.asarray(logits), np.asarray(ref_logits),
                             rtol=1e-2, atol=1e-2)
  np.testing.assert_allclose(np.asarray(attn_w), np.asarray(ref_attn),
                             rtol=1e-2, atol=1e-2)
  np.testing.assert_allclose(np.asarray(prob), np.asarray(ref_prob),
                             rtol=1e-2, atol=1e-2)
  assert logits.shape == (N, TARGET_WIDTH, NUM_CLASSES)
  assert prob.shape == (N, TARGET_WIDTH, NUM_CLASSES)
  assert attn_w.shape == (N, fW, fH * fW)
  print("KERNEL_OK")
</pallas_src>

<mosaic_0001>
module attributes {stable_mosaic.version = 11 : i64} {
  func.func @_semantic_kernel(%arg0: i32, %arg1: memref<1x768x64xf32, #tpu.memory_space<vmem>>, %arg2: memref<48x768xbf16, #tpu.memory_space<vmem>>, %arg3: memref<48x1xf32, #tpu.memory_space<vmem>>, %arg4: memref<96x48xbf16, #tpu.memory_space<vmem>>, %arg5: memref<48x48xbf16, #tpu.memory_space<vmem>>, %arg6: memref<64x8xf32, #tpu.memory_space<vmem>>, %arg7: memref<96x64xf32, #tpu.memory_space<vmem>>, %arg8: memref<8x48xf32, #tpu.memory_space<vmem>>, %arg9: memref<48x64xf32, #tpu.memory_space<vmem>>, %arg10: memref<1x64xf32, #tpu.memory_space<vmem>>, %arg11: memref<64x128xf32, #tpu.memory_space<vmem>>, %arg12: memref<1x128xf32, #tpu.memory_space<vmem>>, %arg13: memref<1x8x128xf32, #tpu.memory_space<vmem>>, %arg14: memref<1x8x64xf32, #tpu.memory_space<vmem>>, %arg15: memref<1x8x128xf32, #tpu.memory_space<vmem>>) attributes {dimension_semantics = [#tpu.dimension_semantics<parallel>], iteration_bounds = array<i64: 2>, scalar_prefetch = 0 : i64, scratch_operands = 0 : i64, tpu.core_type = #tpu.core_type<tc>, window_params = [{transform_indices = @transform_0, window_bounds = array<i64: 1, 768, 64>}, {pipeline_mode = #tpu.pipeline_mode<synchronous>, transform_indices = @transform_1, window_bounds = array<i64: 48, 768>}, {pipeline_mode = #tpu.pipeline_mode<synchronous>, transform_indices = @transform_2, window_bounds = array<i64: 48, 1>}, {pipeline_mode = #tpu.pipeline_mode<synchronous>, transform_indices = @transform_3, window_bounds = array<i64: 96, 48>}, {pipeline_mode = #tpu.pipeline_mode<synchronous>, transform_indices = @transform_4, window_bounds = array<i64: 48, 48>}, {pipeline_mode = #tpu.pipeline_mode<synchronous>, transform_indices = @transform_5, window_bounds = array<i64: 64, 8>}, {pipeline_mode = #tpu.pipeline_mode<synchronous>, transform_indices = @transform_6, window_bounds = array<i64: 96, 64>}, {pipeline_mode = #tpu.pipeline_mode<synchronous>, transform_indices = @transform_7, window_bounds = array<i64: 8, 48>}, {pipeline_mode = #tpu.pipeline_mode<synchronous>, transform_indices = @transform_8, window_bounds = array<i64: 48, 64>}, {pipeline_mode = #tpu.pipeline_mode<synchronous>, transform_indices = @transform_9, window_bounds = array<i64: 1, 64>}, {pipeline_mode = #tpu.pipeline_mode<synchronous>, transform_indices = @transform_10, window_bounds = array<i64: 64, 128>}, {pipeline_mode = #tpu.pipeline_mode<synchronous>, transform_indices = @transform_11, window_bounds = array<i64: 1, 128>}, {transform_indices = @transform_12, window_bounds = array<i64: 1, 8, 128>}, {transform_indices = @transform_13, window_bounds = array<i64: 1, 8, 64>}, {transform_indices = @transform_14, window_bounds = array<i64: 1, 8, 128>}]} {
    %c0 = arith.constant 0 : index
    %c0_0 = arith.constant 0 : index
    %c0_1 = arith.constant 0 : index
    %0 = vector.load %arg1[%c0, %c0_0, %c0_1] : memref<1x768x64xf32, #tpu.memory_space<vmem>>, vector<1x768x64xf32>
    %1 = vector.shape_cast %0 : vector<1x768x64xf32> to vector<768x64xf32>
    %2 = arith.truncf %1 : vector<768x64xf32> to vector<768x64xbf16>
    %c0_2 = arith.constant 0 : index
    %c0_3 = arith.constant 0 : index
    %3 = vector.load %arg2[%c0_2, %c0_3] : memref<48x768xbf16, #tpu.memory_space<vmem>>, vector<48x768xbf16>
    %cst = arith.constant dense<0.000000e+00> : vector<48x64xf32>
    %4 = tpu.matmul %3, %2, %cst {dimension_numbers = #tpu.dot_dimension_numbers<[1], [0], [0], [1], [0, 0, 1, 1], [], []>} : vector<48x768xbf16>, vector<768x64xbf16>, vector<48x64xf32> -> vector<48x64xf32>
    %c0_4 = arith.constant 0 : index
    %c0_5 = arith.constant 0 : index
    %5 = vector.load %arg3[%c0_4, %c0_5] : memref<48x1xf32, #tpu.memory_space<vmem>>, vector<48x1xf32>
    %6 = vector.broadcast %5 : vector<48x1xf32> to vector<48x64xf32>
    %7 = arith.addf %4, %6 : vector<48x64xf32>
    %cst_6 = arith.constant 0.000000e+00 : f32
    %8 = vector.broadcast %cst_6 : f32 to vector<48x64xf32>
    %9 = arith.maximumf %7, %8 : vector<48x64xf32>
    %10 = arith.truncf %9 : vector<48x64xf32> to vector<48x64xbf16>
    %c0_7 = arith.constant 0 : index
    %c0_8 = arith.constant 0 : index
    %11 = vector.load %arg6[%c0_7, %c0_8] : memref<64x8xf32, #tpu.memory_space<vmem>>, vector<64x8xf32>
    %cst_9 = arith.constant dense<0.000000e+00> : vector<48x8xf32>
    %12 = tpu.matmul %9, %11, %cst_9 {dimension_numbers = #tpu.dot_dimension_numbers<[1], [0], [0], [1], [0, 0, 1, 1], [], []>} : vector<48x64xf32>, vector<64x8xf32>, vector<48x8xf32> -> vector<48x8xf32>
    %13 = tpu.transpose %12, [1, 0] : vector<48x8xf32> -> vector<8x48xf32>
    %c0_10 = arith.constant 0 : index
    %c0_11 = arith.constant 0 : index
    %14 = vector.load %arg4[%c0_10, %c0_11] : memref<96x48xbf16, #tpu.memory_space<vmem>>, vector<96x48xbf16>
    %cst_12 = arith.constant dense<0.000000e+00> : vector<96x64xf32>
    %15 = tpu.matmul %14, %10, %cst_12 {dimension_numbers = #tpu.dot_dimension_numbers<[1], [0], [0], [1], [0, 0, 1, 1], [], []>} : vector<96x48xbf16>, vector<48x64xbf16>, vector<96x64xf32> -> vector<96x64xf32>
    %c0_13 = arith.constant 0 : index
    %c0_14 = arith.constant 0 : index
    %16 = vector.load %arg7[%c0_13, %c0_14] : memref<96x64xf32, #tpu.memory_space<vmem>>, vector<96x64xf32>
    %17 = arith.addf %15, %16 : vector<96x64xf32>
    %18 = vector.extract_strided_slice %17 {offsets = [0, 0], sizes = [48, 64], strides = [1, 1]} : vector<96x64xf32> to vector<48x64xf32>
    %19 = vector.extract_strided_slice %17 {offsets = [48, 0], sizes = [48, 64], strides = [1, 1]} : vector<96x64xf32> to vector<48x64xf32>
    %20 = arith.truncf %13 : vector<8x48xf32> to vector<8x48xbf16>
    %c0_15 = arith.constant 0 : index
    %c0_16 = arith.constant 0 : index
    %21 = vector.load %arg5[%c0_15, %c0_16] : memref<48x48xbf16, #tpu.memory_space<vmem>>, vector<48x48xbf16>
    %cst_17 = arith.constant dense<0.000000e+00> : vector<8x48xf32>
    %22 = tpu.matmul %20, %21, %cst_17 {dimension_numbers = #tpu.dot_dimension_numbers<[1], [0], [0], [1], [0, 0, 1, 1], [], []>} : vector<8x48xbf16>, vector<48x48xbf16>, vector<8x48xf32> -> vector<8x48xf32>
    %c0_18 = arith.constant 0 : index
    %c0_19 = arith.constant 0 : index
    %23 = vector.load %arg8[%c0_18, %c0_19] : memref<8x48xf32, #tpu.memory_space<vmem>>, vector<8x48xf32>
    %24 = arith.addf %22, %23 : vector<8x48xf32>
    %cst_20 = arith.constant dense<0.000000e+00> : vector<8x64xf32>
    %25 = tpu.matmul %24, %18, %cst_20 {dimension_numbers = #tpu.dot_dimension_numbers<[1], [0], [0], [1], [0, 0, 1, 1], [], []>} : vector<8x48xf32>, vector<48x64xf32>, vector<8x64xf32> -> vector<8x64xf32>
    %cst_21 = arith.constant 0.144337565 : f32
    %26 = vector.broadcast %cst_21 : f32 to vector<8x64xf32>
    %27 = arith.mulf %25, %26 : vector<8x64xf32>
    %cst_22 = arith.constant dense<0xFF800000> : vector<8xf32>
    %28 = vector.multi_reduction <maximumf>, %27, %cst_22 [1] : vector<8x64xf32> to vector<8xf32>
    %29 = vector.shape_cast %28 : vector<8xf32> to vector<8x1xf32>
    %30 = vector.broadcast %29 : vector<8x1xf32> to vector<8x64xf32>
    %31 = arith.subf %27, %30 : vector<8x64xf32>
    %32 = math.exp %31 : vector<8x64xf32>
    %cst_23 = arith.constant dense<0.000000e+00> : vector<8xf32>
    %33 = vector.multi_reduction <add>, %32, %cst_23 [1] : vector<8x64xf32> to vector<8xf32>
    %34 = vector.shape_cast %33 : vector<8xf32> to vector<8x1xf32>
    %35 = tpu.reciprocal %34 {approx = true} : vector<8x1xf32> -> vector<8x1xf32>
    %36 = vector.broadcast %35 : vector<8x1xf32> to vector<8x64xf32>
    %37 = arith.mulf %32, %36 : vector<8x64xf32>
    %cst_24 = arith.constant dense<0.000000e+00> : vector<8x48xf32>
    %38 = tpu.matmul %37, %19, %cst_24 {dimension_numbers = #tpu.dot_dimension_numbers<[1], [1], [0], [0], [0, 0, 1, 0], [], []>} : vector<8x64xf32>, vector<48x64xf32>, vector<8x48xf32> -> vector<8x48xf32>
    %c0_25 = arith.constant 0 : index
    %c0_26 = arith.constant 0 : index
    %39 = vector.load %arg9[%c0_25, %c0_26] : memref<48x64xf32, #tpu.memory_space<vmem>>, vector<48x64xf32>
    %cst_27 = arith.constant dense<0.000000e+00> : vector<8x64xf32>
    %40 = tpu.matmul %38, %39, %cst_27 {dimension_numbers = #tpu.dot_dimension_numbers<[1], [0], [0], [1], [0, 0, 1, 1], [], []>} : vector<8x48xf32>, vector<48x64xf32>, vector<8x64xf32> -> vector<8x64xf32>
    %c0_28 = arith.constant 0 : index
    %c0_29 = arith.constant 0 : index
    %41 = vector.load %arg10[%c0_28, %c0_29] : memref<1x64xf32, #tpu.memory_space<vmem>>, vector<1x64xf32>
    %42 = vector.broadcast %41 : vector<1x64xf32> to vector<8x64xf32>
    %43 = arith.addf %40, %42 : vector<8x64xf32>
    %cst_30 = arith.constant 0.000000e+00 : f32
    %44 = vector.broadcast %cst_30 : f32 to vector<8x64xf32>
    %45 = arith.maximumf %43, %44 : vector<8x64xf32>
    %c0_31 = arith.constant 0 : index
    %c0_32 = arith.constant 0 : index
    %46 = vector.load %arg11[%c0_31, %c0_32] : memref<64x128xf32, #tpu.memory_space<vmem>>, vector<64x128xf32>
    %cst_33 = arith.constant dense<0.000000e+00> : vector<8x128xf32>
    %47 = tpu.matmul %45, %46, %cst_33 {dimension_numbers = #tpu.dot_dimension_numbers<[1], [0], [0], [1], [0, 0, 1, 1], [], []>} : vector<8x64xf32>, vector<64x128xf32>, vector<8x128xf32> -> vector<8x128xf32>
    %c0_34 = arith.constant 0 : index
    %c0_35 = arith.constant 0 : index
    %48 = vector.load %arg12[%c0_34, %c0_35] : memref<1x128xf32, #tpu.memory_space<vmem>>, vector<1x128xf32>
    %49 = vector.broadcast %48 : vector<1x128xf32> to vector<8x128xf32>
    %50 = arith.addf %47, %49 : vector<8x128xf32>
    %cst_36 = arith.constant dense<0xFF800000> : vector<8xf32>
    %51 = vector.multi_reduction <maximumf>, %50, %cst_36 [1] : vector<8x128xf32> to vector<8xf32>
    %52 = vector.shape_cast %51 : vector<8xf32> to vector<8x1xf32>
    %53 = vector.broadcast %52 : vector<8x1xf32> to vector<8x128xf32>
    %54 = arith.subf %50, %53 : vector<8x128xf32>
    %55 = math.exp %54 : vector<8x128xf32>
    %cst_37 = arith.constant dense<0.000000e+00> : vector<8xf32>
    %56 = vector.multi_reduction <add>, %55, %cst_37 [1] : vector<8x128xf32> to vector<8xf32>
    %57 = vector.shape_cast %56 : vector<8xf32> to vector<8x1xf32>
    %58 = tpu.reciprocal %57 {approx = true} : vector<8x1xf32> -> vector<8x1xf32>
    %59 = vector.broadcast %58 : vector<8x1xf32> to vector<8x128xf32>
    %60 = arith.mulf %55, %59 : vector<8x128xf32>
    %c0_38 = arith.constant 0 : index
    %c0_39 = arith.constant 0 : index
    %c0_40 = arith.constant 0 : index
    %61 = vector.load %arg13[%c0_38, %c0_39, %c0_40] : memref<1x8x128xf32, #tpu.memory_space<vmem>>, vector<1x8x128xf32>
    %62 = vector.shape_cast %61 : vector<1x8x128xf32> to vector<8x128xf32>
    %63 = vector.shape_cast %50 : vector<8x128xf32> to vector<1x8x128xf32>
    tpu.vector_store %arg13[%c0_38, %c0_39, %c0_40], %63 {strides = array<i32>} : memref<1x8x128xf32, #tpu.memory_space<vmem>>, vector<1x8x128xf32>,
    %c0_41 = arith.constant 0 : index
    %c0_42 = arith.constant 0 : index
    %c0_43 = arith.constant 0 : index
    %64 = vector.load %arg14[%c0_41, %c0_42, %c0_43] : memref<1x8x64xf32, #tpu.memory_space<vmem>>, vector<1x8x64xf32>
    %65 = vector.shape_cast %64 : vector<1x8x64xf32> to vector<8x64xf32>
    %66 = vector.shape_cast %37 : vector<8x64xf32> to vector<1x8x64xf32>
    tpu.vector_store %arg14[%c0_41, %c0_42, %c0_43], %66 {strides = array<i32>} : memref<1x8x64xf32, #tpu.memory_space<vmem>>, vector<1x8x64xf32>,
    %c0_44 = arith.constant 0 : index
    %c0_45 = arith.constant 0 : index
    %c0_46 = arith.constant 0 : index
    %67 = vector.load %arg15[%c0_44, %c0_45, %c0_46] : memref<1x8x128xf32, #tpu.memory_space<vmem>>, vector<1x8x128xf32>
    %68 = vector.shape_cast %67 : vector<1x8x128xf32> to vector<8x128xf32>
    %69 = vector.shape_cast %60 : vector<8x128xf32> to vector<1x8x128xf32>
    tpu.vector_store %arg15[%c0_44, %c0_45, %c0_46], %69 {strides = array<i32>} : memref<1x8x128xf32, #tpu.memory_space<vmem>>, vector<1x8x128xf32>,
    return
  }
  func.func @transform_0(%arg0: i32) -> (i32, i32, i32) {
    %c0_i32 = arith.constant 0 : i32
    %c0_i32_0 = arith.constant 0 : i32
    %c0_i32_1 = arith.constant 0 : i32
    return %arg0, %c0_i32, %c0_i32_0 : i32, i32, i32
  }
  func.func @transform_1(%arg0: i32) -> (i32, i32) {
    %c0_i32 = arith.constant 0 : i32
    %c0_i32_0 = arith.constant 0 : i32
    %c0_i32_1 = arith.constant 0 : i32
    return %c0_i32, %c0_i32_0 : i32, i32
  }
  func.func @transform_2(%arg0: i32) -> (i32, i32) {
    %c0_i32 = arith.constant 0 : i32
    %c0_i32_0 = arith.constant 0 : i32
    %c0_i32_1 = arith.constant 0 : i32
    return %c0_i32, %c0_i32_0 : i32, i32
  }
  func.func @transform_3(%arg0: i32) -> (i32, i32) {
    %c0_i32 = arith.constant 0 : i32
    %c0_i32_0 = arith.constant 0 : i32
    %c0_i32_1 = arith.constant 0 : i32
    return %c0_i32, %c0_i32_0 : i32, i32
  }
  func.func @transform_4(%arg0: i32) -> (i32, i32) {
    %c0_i32 = arith.constant 0 : i32
    %c0_i32_0 = arith.constant 0 : i32
    %c0_i32_1 = arith.constant 0 : i32
    return %c0_i32, %c0_i32_0 : i32, i32
  }
  func.func @transform_5(%arg0: i32) -> (i32, i32) {
    %c0_i32 = arith.constant 0 : i32
    %c0_i32_0 = arith.constant 0 : i32
    %c0_i32_1 = arith.constant 0 : i32
    return %c0_i32, %c0_i32_0 : i32, i32
  }
  func.func @transform_6(%arg0: i32) -> (i32, i32) {
    %c0_i32 = arith.constant 0 : i32
    %c0_i32_0 = arith.constant 0 : i32
    %c0_i32_1 = arith.constant 0 : i32
    return %c0_i32, %c0_i32_0 : i32, i32
  }
  func.func @transform_7(%arg0: i32) -> (i32, i32) {
    %c0_i32 = arith.constant 0 : i32
    %c0_i32_0 = arith.constant 0 : i32
    %c0_i32_1 = arith.constant 0 : i32
    return %c0_i32, %c0_i32_0 : i32, i32
  }
  func.func @transform_8(%arg0: i32) -> (i32, i32) {
    %c0_i32 = arith.constant 0 : i32
    %c0_i32_0 = arith.constant 0 : i32
    %c0_i32_1 = arith.constant 0 : i32
    return %c0_i32, %c0_i32_0 : i32, i32
  }
  func.func @transform_9(%arg0: i32) -> (i32, i32) {
    %c0_i32 = arith.constant 0 : i32
    %c0_i32_0 = arith.constant 0 : i32
    %c0_i32_1 = arith.constant 0 : i32
    return %c0_i32, %c0_i32_0 : i32, i32
  }
  func.func @transform_10(%arg0: i32) -> (i32, i32) {
    %c0_i32 = arith.constant 0 : i32
    %c0_i32_0 = arith.constant 0 : i32
    %c0_i32_1 = arith.constant 0 : i32
    return %c0_i32, %c0_i32_0 : i32, i32
  }
  func.func @transform_11(%arg0: i32) -> (i32, i32) {
    %c0_i32 = arith.constant 0 : i32
    %c0_i32_0 = arith.constant 0 : i32
    %c0_i32_1 = arith.constant 0 : i32
    return %c0_i32, %c0_i32_0 : i32, i32
  }
  func.func @transform_12(%arg0: i32) -> (i32, i32, i32) {
    %c0_i32 = arith.constant 0 : i32
    %c0_i32_0 = arith.constant 0 : i32
    %c0_i32_1 = arith.constant 0 : i32
    return %arg0, %c0_i32, %c0_i32_0 : i32, i32, i32
  }
  func.func @transform_13(%arg0: i32) -> (i32, i32, i32) {
    %c0_i32 = arith.constant 0 : i32
    %c0_i32_0 = arith.constant 0 : i32
    %c0_i32_1 = arith.constant 0 : i32
    return %arg0, %c0_i32, %c0_i32_0 : i32, i32, i32
  }
  func.func @transform_14(%arg0: i32) -> (i32, i32, i32) {
    %c0_i32 = arith.constant 0 : i32
    %c0_i32_0 = arith.constant 0 : i32
    %c0_i32_1 = arith.constant 0 : i32
    return %arg0, %c0_i32, %c0_i32_0 : i32, i32, i32
  }
}

</mosaic_0001>

<llo_original>
// kernel: tpu_custom_call.1
$region0: #{tpu_custom_call.1}
  #allocation0 [shape = 'u32[]', space=smem, size = 0x4, offset = 0x4, fixed_abs, tag = 'smem constant byte address 0x4 - core index']
  #allocation1 [shape = 'u32[144,128]{1,0:T(1,128)}', space=vmem, size = 0x12000, scoped, tag = 'internal scratch']
  %s0 = inlined_call_operand.vmem [shape: f32[2,768,64], index: 0, kind: input, shape index: {}]
  %s1 = inlined_call_operand.vmem [shape: bf16[48,768], index: 1, kind: input, shape index: {}]
  %s2 = inlined_call_operand.vmem [shape: f32[48,1], index: 2, kind: input, shape index: {}]
  %s3 = inlined_call_operand.vmem [shape: bf16[96,48], index: 3, kind: input, shape index: {}]
  %s4 = inlined_call_operand.vmem [shape: bf16[48,48], index: 4, kind: input, shape index: {}]
  %s5 = inlined_call_operand.vmem [shape: f32[64,8], index: 5, kind: input, shape index: {}]
  %s6 = inlined_call_operand.vmem [shape: f32[96,64], index: 6, kind: input, shape index: {}]
  %s7 = inlined_call_operand.vmem [shape: f32[8,48], index: 7, kind: input, shape index: {}]
  %s8 = inlined_call_operand.vmem [shape: f32[48,64], index: 8, kind: input, shape index: {}]
  %s9 = inlined_call_operand.vmem [shape: f32[1,64], index: 9, kind: input, shape index: {}]
  %s10 = inlined_call_operand.vmem [shape: f32[64,128], index: 10, kind: input, shape index: {}]
  %s11 = inlined_call_operand.vmem [shape: f32[1,128], index: 11, kind: input, shape index: {}]
  %s12 = inlined_call_operand.hbm [shape: f32[2,8,128], index: 12, kind: output, shape index: {0}]
  %s13 = inlined_call_operand.hbm [shape: f32[2,8,64], index: 13, kind: output, shape index: {1}]
  %s14 = inlined_call_operand.hbm [shape: f32[2,8,128], index: 14, kind: output, shape index: {2}]
  %15 = xla_tuple %s12, %s13, %s14
  %s16 = sld [smem:[#allocation0]]
  $region97: #{tpu_custom_call.1} parent=0
    _
  %s18 = ssub.s32 1, %s16
  %s19 = scalar_select 0, %s18, %s16
  $region1: #{tpu_custom_call.1} parent=0
    #allocation2 [shape = 'u8[8192]{0}', space=vmem, size = 0x2000, scoped, tag = 'output window, operand 0']
    #allocation3 [shape = 's32[2]{0}', space=sflag, size = 0x8, scoped, tag = 'scoped memory for tpu_custom_call.1']
    #allocation4 [shape = 'u8[8192]{0}', space=vmem, size = 0x2000, scoped, tag = 'output window, operand 1']
    #allocation5 [shape = 's32[2]{0}', space=sflag, size = 0x8, scoped, tag = 'scoped memory for tpu_custom_call.1']
    #allocation6 [shape = 'u8[8192]{0}', space=vmem, size = 0x2000, scoped, tag = 'output window, operand 2']
    %20 = vsyncpa [#allocation3], 0
    %s21 = scalar_lea.sflag [#allocation3], 1
    %22 = vsyncpa %s21, 0
    %23 = vsyncpa [#allocation5], 0
    %s24 = scalar_lea.sflag [#allocation5], 1
    %25 = vsyncpa %s24, 0
    loop: start=0, step=1, limit=4
    $region2: #{tpu_custom_call.1} parent=1 // loop_pre_header
      _
    $region3: #{tpu_custom_call.1} parent=1 // loop_header
      %s27 = sphi 0, %s31
      %p28 = scmp.ge.s32.totalorder %s27, 4
      %s37 = sphi 0, %s39
      %s40 = sphi 0, %s37
      %s41 = sphi 0, %s40
      %s57 = sphi 0, %s41
      %s61 = sphi 0, %s61
      %s63 = sphi 0, %s61
      %s64 = sphi 0, %s63
      %s78 = sphi 0, %s64
      %s82 = sphi 0, %s82
      %s84 = sphi 0, %s82
      %s85 = sphi 0, %s84
      %s99 = sphi 0, %s85
      %s103 = sphi 0, %s103
      %s105 = sphi 0, %s103
      %s106 = sphi 0, %s105
      %s120 = sphi 0, %s106
      %s124 = sphi 0, %s124
      %s126 = sphi 0, %s124
      %s127 = sphi 0, %s126
      %s141 = sphi 0, %s127
      %s145 = sphi 0, %s145
      %s147 = sphi 0, %s145
      %s148 = sphi 0, %s147
      %s162 = sphi 0, %s148
      %s166 = sphi 0, %s166
      %s168 = sphi 0, %s166
      %s169 = sphi 0, %s168
      %s183 = sphi 0, %s169
      %s187 = sphi 0, %s187
      %s189 = sphi 0, %s187
      %s190 = sphi 0, %s189
      %s204 = sphi 0, %s190
      %s208 = sphi 0, %s208
      %s210 = sphi 0, %s208
      %s211 = sphi 0, %s210
      %s225 = sphi 0, %s211
      %s229 = sphi 0, %s229
      %s231 = sphi 0, %s229
      %s232 = sphi 0, %s231
      %s246 = sphi 0, %s232
      %s250 = sphi 0, %s250
      %s252 = sphi 0, %s250
      %s253 = sphi 0, %s252
      %s267 = sphi 0, %s253
      %s271 = sphi 0, %s271
      %s273 = sphi 0, %s271
      %s274 = sphi 0, %s273
      %s288 = sphi 0, %s274
      %s294 = sphi 0, %s296
      %s297 = sphi 0, %s294
      %s298 = sphi 0, %s297
      %s314 = sphi 0, %s298
      %s320 = sphi 0, %s322
      %s323 = sphi 0, %s320
      %s324 = sphi 0, %s323
      %s340 = sphi 0, %s324
      %s346 = sphi 0, %s348
      %s349 = sphi 0, %s346
      %s350 = sphi 0, %s349
      %s366 = sphi 0, %s350
    $region4: #{tpu_custom_call.1} parent=1 // loop_header_branch
      %30 = sbr.rel (%p28) target = $region8
    $region5: #{tpu_custom_call.1} parent=1 // loop_body
      %s32 = ssub.s32 %s27, 1
      %s33 = ssub.s32 %s27, 2
      %s34 = sadd.s32 %s27, 1
      %s35 = ssub.s32 %s27, %s34
      %p36 = scmp.eq.s32.totalorder %s35, 0
      %s38 = sadd.s32 %s37, 1
      %s39 = scalar_select %p36, %s37, %s38
      %p42 = pneg %p36
      %p43 = scmp.eq.s32.totalorder %s27, 1
      %p44 = por %p42, %p43
      %p45 = scmp.ne.s32.totalorder %s37, %s40
      %p46 = scmp.eq.s32.totalorder %s27, 0
      %p47 = por %p45, %p46
      %p48 = scmp.ne.s32.totalorder %s37, %s40
      %p49 = scmp.eq.s32.totalorder %s32, 1
      %p50 = por %p48, %p49
      %p51 = scmp.ne.s32.totalorder %s40, %s41
      %p52 = scmp.eq.s32.totalorder %s32, 0
      %p53 = por %p51, %p52
      %p54 = scmp.ne.s32.totalorder %s40, %s41
      %p55 = scmp.eq.s32.totalorder %s33, 1
      %p56 = por %p54, %p55
      %p58 = scmp.ne.s32.totalorder %s41, %s57
      %p59 = scmp.eq.s32.totalorder %s33, 0
      %p60 = por %p58, %p59
      %s62 = sadd.s32 %s61, 1
      %p65 = scmp.eq.s32.totalorder %s27, 1
      %p66 = scmp.ne.s32.totalorder %s61, %s63
      %p67 = scmp.eq.s32.totalorder %s27, 0
      %p68 = por %p66, %p67
      %p69 = scmp.ne.s32.totalorder %s61, %s63
      %p70 = scmp.eq.s32.totalorder %s32, 1
      %p71 = por %p69, %p70
      %p72 = scmp.ne.s32.totalorder %s63, %s64
      %p73 = scmp.eq.s32.totalorder %s32, 0
      %p74 = por %p72, %p73
      %p75 = scmp.ne.s32.totalorder %s63, %s64
      %p76 = scmp.eq.s32.totalorder %s33, 1
      %p77 = por %p75, %p76
      %p79 = scmp.ne.s32.totalorder %s64, %s78
      %p80 = scmp.eq.s32.totalorder %s33, 0
      %p81 = por %p79, %p80
      %s83 = sadd.s32 %s82, 1
      %p86 = scmp.eq.s32.totalorder %s27, 1
      %p87 = scmp.ne.s32.totalorder %s82, %s84
      %p88 = scmp.eq.s32.totalorder %s27, 0
      %p89 = por %p87, %p88
      %p90 = scmp.ne.s32.totalorder %s82, %s84
      %p91 = scmp.eq.s32.totalorder %s32, 1
      %p92 = por %p90, %p91
      %p93 = scmp.ne.s32.totalorder %s84, %s85
      %p94 = scmp.eq.s32.totalorder %s32, 0
      %p95 = por %p93, %p94
      %p96 = scmp.ne.s32.totalorder %s84, %s85
      %p97 = scmp.eq.s32.totalorder %s33, 1
      %p98 = por %p96, %p97
      %p100 = scmp.ne.s32.totalorder %s85, %s99
      %p101 = scmp.eq.s32.totalorder %s33, 0
      %p102 = por %p100, %p101
      %s104 = sadd.s32 %s103, 1
      %p107 = scmp.eq.s32.totalorder %s27, 1
      %p108 = scmp.ne.s32.totalorder %s103, %s105
      %p109 = scmp.eq.s32.totalorder %s27, 0
      %p110 = por %p108, %p109
      %p111 = scmp.ne.s32.totalorder %s103, %s105
      %p112 = scmp.eq.s32.totalorder %s32, 1
      %p113 = por %p111, %p112
      %p114 = scmp.ne.s32.totalorder %s105, %s106
      %p115 = scmp.eq.s32.totalorder %s32, 0
      %p116 = por %p114, %p115
      %p117 = scmp.ne.s32.totalorder %s105, %s106
      %p118 = scmp.eq.s32.totalorder %s33, 1
      %p119 = por %p117, %p118
      %p121 = scmp.ne.s32.totalorder %s106, %s120
      %p122 = scmp.eq.s32.totalorder %s33, 0
      %p123 = por %p121, %p122
      %s125 = sadd.s32 %s124, 1
      %p128 = scmp.eq.s32.totalorder %s27, 1
      %p129 = scmp.ne.s32.totalorder %s124, %s126
      %p130 = scmp.eq.s32.totalorder %s27, 0
      %p131 = por %p129, %p130
      %p132 = scmp.ne.s32.totalorder %s124, %s126
      %p133 = scmp.eq.s32.totalorder %s32, 1
      %p134 = por %p132, %p133
      %p135 = scmp.ne.s32.totalorder %s126, %s127
      %p136 = scmp.eq.s32.totalorder %s32, 0
      %p137 = por %p135, %p136
      %p138 = scmp.ne.s32.totalorder %s126, %s127
      %p139 = scmp.eq.s32.totalorder %s33, 1
      %p140 = por %p138, %p139
      %p142 = scmp.ne.s32.totalorder %s127, %s141
      %p143 = scmp.eq.s32.totalorder %s33, 0
      %p144 = por %p142, %p143
      %s146 = sadd.s32 %s145, 1
      %p149 = scmp.eq.s32.totalorder %s27, 1
      %p150 = scmp.ne.s32.totalorder %s145, %s147
      %p151 = scmp.eq.s32.totalorder %s27, 0
      %p152 = por %p150, %p151
      %p153 = scmp.ne.s32.totalorder %s145, %s147
      %p154 = scmp.eq.s32.totalorder %s32, 1
      %p155 = por %p153, %p154
      %p156 = scmp.ne.s32.totalorder %s147, %s148
      %p157 = scmp.eq.s32.totalorder %s32, 0
      %p158 = por %p156, %p157
      %p159 = scmp.ne.s32.totalorder %s147, %s148
      %p160 = scmp.eq.s32.totalorder %s33, 1
      %p161 = por %p159, %p160
      %p163 = scmp.ne.s32.totalorder %s148, %s162
      %p164 = scmp.eq.s32.totalorder %s33, 0
      %p165 = por %p163, %p164
      %s167 = sadd.s32 %s166, 1
      %p170 = scmp.eq.s32.totalorder %s27, 1
      %p171 = scmp.ne.s32.totalorder %s166, %s168
      %p172 = scmp.eq.s32.totalorder %s27, 0
      %p173 = por %p171, %p172
      %p174 = scmp.ne.s32.totalorder %s166, %s168
      %p175 = scmp.eq.s32.totalorder %s32, 1
      %p176 = por %p174, %p175
      %p177 = scmp.ne.s32.totalorder %s168, %s169
      %p178 = scmp.eq.s32.totalorder %s32, 0
      %p179 = por %p177, %p178
      %p180 = scmp.ne.s32.totalorder %s168, %s169
      %p181 = scmp.eq.s32.totalorder %s33, 1
      %p182 = por %p180, %p181
      %p184 = scmp.ne.s32.totalorder %s169, %s183
      %p185 = scmp.eq.s32.totalorder %s33, 0
      %p186 = por %p184, %p185
      %s188 = sadd.s32 %s187, 1
      %p191 = scmp.eq.s32.totalorder %s27, 1
      %p192 = scmp.ne.s32.totalorder %s187, %s189
      %p193 = scmp.eq.s32.totalorder %s27, 0
      %p194 = por %p192, %p193
      %p195 = scmp.ne.s32.totalorder %s187, %s189
      %p196 = scmp.eq.s32.totalorder %s32, 1
      %p197 = por %p195, %p196
      %p198 = scmp.ne.s32.totalorder %s189, %s190
      %p199 = scmp.eq.s32.totalorder %s32, 0
      %p200 = por %p198, %p199
      %p201 = scmp.ne.s32.totalorder %s189, %s190
      %p202 = scmp.eq.s32.totalorder %s33, 1
      %p203 = por %p201, %p202
      %p205 = scmp.ne.s32.totalorder %s190, %s204
      %p206 = scmp.eq.s32.totalorder %s33, 0
      %p207 = por %p205, %p206
      %s209 = sadd.s32 %s208, 1
      %p212 = scmp.eq.s32.totalorder %s27, 1
      %p213 = scmp.ne.s32.totalorder %s208, %s210
      %p214 = scmp.eq.s32.totalorder %s27, 0
      %p215 = por %p213, %p214
      %p216 = scmp.ne.s32.totalorder %s208, %s210
      %p217 = scmp.eq.s32.totalorder %s32, 1
      %p218 = por %p216, %p217
      %p219 = scmp.ne.s32.totalorder %s210, %s211
      %p220 = scmp.eq.s32.totalorder %s32, 0
      %p221 = por %p219, %p220
      %p222 = scmp.ne.s32.totalorder %s210, %s211
      %p223 = scmp.eq.s32.totalorder %s33, 1
      %p224 = por %p222, %p223
      %p226 = scmp.ne.s32.totalorder %s211, %s225
      %p227 = scmp.eq.s32.totalorder %s33, 0
      %p228 = por %p226, %p227
      %s230 = sadd.s32 %s229, 1
      %p233 = scmp.eq.s32.totalorder %s27, 1
      %p234 = scmp.ne.s32.totalorder %s229, %s231
      %p235 = scmp.eq.s32.totalorder %s27, 0
      %p236 = por %p234, %p235
      %p237 = scmp.ne.s32.totalorder %s229, %s231
      %p238 = scmp.eq.s32.totalorder %s32, 1
      %p239 = por %p237, %p238
      %p240 = scmp.ne.s32.totalorder %s231, %s232
      %p241 = scmp.eq.s32.totalorder %s32, 0
      %p242 = por %p240, %p241
      %p243 = scmp.ne.s32.totalorder %s231, %s232
      %p244 = scmp.eq.s32.totalorder %s33, 1
      %p245 = por %p243, %p244
      %p247 = scmp.ne.s32.totalorder %s232, %s246
      %p248 = scmp.eq.s32.totalorder %s33, 0
      %p249 = por %p247, %p248
      %s251 = sadd.s32 %s250, 1
      %p254 = scmp.eq.s32.totalorder %s27, 1
      %p255 = scmp.ne.s32.totalorder %s250, %s252
      %p256 = scmp.eq.s32.totalorder %s27, 0
      %p257 = por %p255, %p256
      %p258 = scmp.ne.s32.totalorder %s250, %s252
      %p259 = scmp.eq.s32.totalorder %s32, 1
      %p260 = por %p258, %p259
      %p261 = scmp.ne.s32.totalorder %s252, %s253
      %p262 = scmp.eq.s32.totalorder %s32, 0
      %p263 = por %p261, %p262
      %p264 = scmp.ne.s32.totalorder %s252, %s253
      %p265 = scmp.eq.s32.totalorder %s33, 1
      %p266 = por %p264, %p265
      %p268 = scmp.ne.s32.totalorder %s253, %s267
      %p269 = scmp.eq.s32.totalorder %s33, 0
      %p270 = por %p268, %p269
      %s272 = sadd.s32 %s271, 1
      %p275 = scmp.eq.s32.totalorder %s27, 1
      %p276 = scmp.ne.s32.totalorder %s271, %s273
      %p277 = scmp.eq.s32.totalorder %s27, 0
      %p278 = por %p276, %p277
      %p279 = scmp.ne.s32.totalorder %s271, %s273
      %p280 = scmp.eq.s32.totalorder %s32, 1
      %p281 = por %p279, %p280
      %p282 = scmp.ne.s32.totalorder %s273, %s274
      %p283 = scmp.eq.s32.totalorder %s32, 0
      %p284 = por %p282, %p283
      %p285 = scmp.ne.s32.totalorder %s273, %s274
      %p286 = scmp.eq.s32.totalorder %s33, 1
      %p287 = por %p285, %p286
      %p289 = scmp.ne.s32.totalorder %s274, %s288
      %p290 = scmp.eq.s32.totalorder %s33, 0
      %p291 = por %p289, %p290
      %s292 = ssub.s32 %s27, %s34
      %p293 = scmp.eq.s32.totalorder %s292, 0
      %s295 = sadd.s32 %s294, 1
      %s296 = scalar_select %p293, %s294, %s295
      %p299 = pneg %p293
      %p300 = scmp.eq.s32.totalorder %s27, 1
      %p301 = por %p299, %p300
      %p302 = scmp.ne.s32.totalorder %s294, %s297
      %p303 = scmp.eq.s32.totalorder %s27, 0
      %p304 = por %p302, %p303
      %p305 = scmp.ne.s32.totalorder %s294, %s297
      %p306 = scmp.eq.s32.totalorder %s32, 1
      %p307 = por %p305, %p306
      %p308 = scmp.ne.s32.totalorder %s297, %s298
      %p309 = scmp.eq.s32.totalorder %s32, 0
      %p310 = por %p308, %p309
      %p311 = scmp.ne.s32.totalorder %s297, %s298
      %p312 = scmp.eq.s32.totalorder %s33, 1
      %p313 = por %p311, %p312
      %p315 = scmp.ne.s32.totalorder %s298, %s314
      %p316 = scmp.eq.s32.totalorder %s33, 0
      %p317 = por %p315, %p316
      %s318 = ssub.s32 %s27, %s34
      %p319 = scmp.eq.s32.totalorder %s318, 0
      %s321 = sadd.s32 %s320, 1
      %s322 = scalar_select %p319, %s320, %s321
      %p325 = pneg %p319
      %p326 = scmp.eq.s32.totalorder %s27, 1
      %p327 = por %p325, %p326
      %p328 = scmp.ne.s32.totalorder %s320, %s323
      %p329 = scmp.eq.s32.totalorder %s27, 0
      %p330 = por %p328, %p329
      %p331 = scmp.ne.s32.totalorder %s320, %s323
      %p332 = scmp.eq.s32.totalorder %s32, 1
      %p333 = por %p331, %p332
      %p334 = scmp.ne.s32.totalorder %s323, %s324
      %p335 = scmp.eq.s32.totalorder %s32, 0
      %p336 = por %p334, %p335
      %p337 = scmp.ne.s32.totalorder %s323, %s324
      %p338 = scmp.eq.s32.totalorder %s33, 1
      %p339 = por %p337, %p338
      %p341 = scmp.ne.s32.totalorder %s324, %s340
      %p342 = scmp.eq.s32.totalorder %s33, 0
      %p343 = por %p341, %p342
      %s344 = ssub.s32 %s27, %s34
      %p345 = scmp.eq.s32.totalorder %s344, 0
      %s347 = sadd.s32 %s346, 1
      %s348 = scalar_select %p345, %s346, %s347
      %p351 = pneg %p345
      %p352 = scmp.eq.s32.totalorder %s27, 1
      %p353 = por %p351, %p352
      %p354 = scmp.ne.s32.totalorder %s346, %s349
      %p355 = scmp.eq.s32.totalorder %s27, 0
      %p356 = por %p354, %p355
      %p357 = scmp.ne.s32.totalorder %s346, %s349
      %p358 = scmp.eq.s32.totalorder %s32, 1
      %p359 = por %p357, %p358
      %p360 = scmp.ne.s32.totalorder %s349, %s350
      %p361 = scmp.eq.s32.totalorder %s32, 0
      %p362 = por %p360, %p361
      %p363 = scmp.ne.s32.totalorder %s349, %s350
      %p364 = scmp.eq.s32.totalorder %s33, 1
      %p365 = por %p363, %p364
      %p367 = scmp.ne.s32.totalorder %s350, %s366
      %p368 = scmp.eq.s32.totalorder %s33, 0
      %p369 = por %p367, %p368
      %p370 = scmp.le.s32.totalorder 1, %s27
      %p371 = scmp.lt.s32.totalorder %s27, 3
      %p372 = pnand %p370, %p371
      %p373 = pneg %p372
      // Predicated region
      $region9: #{tpu_custom_call.1} parent=5 // pred_check
        _
      $region10: #{tpu_custom_call.1} parent=5 // pred_check_branch
        %375 = sbr.rel (%p372) target = $region12
      $region11: #{tpu_custom_call.1} parent=5 // pred_region
        %s376 = ssub.s32 %s27, 1
        // Predicated region
        $region13: #{tpu_custom_call.1} parent=11 // pred_check
          %p377 = pneg %p74
        $region14: #{tpu_custom_call.1} parent=11 // pred_check_branch
          %379 = sbr.rel (%p377) target = $region16
        $region15: #{tpu_custom_call.1} parent=11 // pred_region
          _
        $region16: #{tpu_custom_call.1} parent=11 // pred_fallthru
          _
        // Predicated region
        $region17: #{tpu_custom_call.1} parent=11 // pred_check
          %p380 = pneg %p95
        $region18: #{tpu_custom_call.1} parent=11 // pred_check_branch
          %382 = sbr.rel (%p380) target = $region20
        $region19: #{tpu_custom_call.1} parent=11 // pred_region
          _
        $region20: #{tpu_custom_call.1} parent=11 // pred_fallthru
          _
        // Predicated region
        $region21: #{tpu_custom_call.1} parent=11 // pred_check
          %p383 = pneg %p116
        $region22: #{tpu_custom_call.1} parent=11 // pred_check_branch
          %385 = sbr.rel (%p383) target = $region24
        $region23: #{tpu_custom_call.1} parent=11 // pred_region
          _
        $region24: #{tpu_custom_call.1} parent=11 // pred_fallthru
          _
        // Predicated region
        $region25: #{tpu_custom_call.1} parent=11 // pred_check
          %p386 = pneg %p137
        $region26: #{tpu_custom_call.1} parent=11 // pred_check_branch
          %388 = sbr.rel (%p386) target = $region28
        $region27: #{tpu_custom_call.1} parent=11 // pred_region
          _
        $region28: #{tpu_custom_call.1} parent=11 // pred_fallthru
          _
        // Predicated region
        $region29: #{tpu_custom_call.1} parent=11 // pred_check
          %p389 = pneg %p158
        $region30: #{tpu_custom_call.1} parent=11 // pred_check_branch
          %391 = sbr.rel (%p389) target = $region32
        $region31: #{tpu_custom_call.1} parent=11 // pred_region
          _
        $region32: #{tpu_custom_call.1} parent=11 // pred_fallthru
          _
        // Predicated region
        $region33: #{tpu_custom_call.1} parent=11 // pred_check
          %p392 = pneg %p179
        $region34: #{tpu_custom_call.1} parent=11 // pred_check_branch
          %394 = sbr.rel (%p392) target = $region36
        $region35: #{tpu_custom_call.1} parent=11 // pred_region
          _
        $region36: #{tpu_custom_call.1} parent=11 // pred_fallthru
          _
        // Predicated region
        $region37: #{tpu_custom_call.1} parent=11 // pred_check
          %p395 = pneg %p200
        $region38: #{tpu_custom_call.1} parent=11 // pred_check_branch
          %397 = sbr.rel (%p395) target = $region40
        $region39: #{tpu_custom_call.1} parent=11 // pred_region
          _
        $region40: #{tpu_custom_call.1} parent=11 // pred_fallthru
          _
        // Predicated region
        $region41: #{tpu_custom_call.1} parent=11 // pred_check
          %p398 = pneg %p221
        $region42: #{tpu_custom_call.1} parent=11 // pred_check_branch
          %400 = sbr.rel (%p398) target = $region44
        $region43: #{tpu_custom_call.1} parent=11 // pred_region
          _
        $region44: #{tpu_custom_call.1} parent=11 // pred_fallthru
          _
        // Predicated region
        $region45: #{tpu_custom_call.1} parent=11 // pred_check
          %p401 = pneg %p242
        $region46: #{tpu_custom_call.1} parent=11 // pred_check_branch
          %403 = sbr.rel (%p401) target = $region48
        $region47: #{tpu_custom_call.1} parent=11 // pred_region
          _
        $region48: #{tpu_custom_call.1} parent=11 // pred_fallthru
          _
        // Predicated region
        $region49: #{tpu_custom_call.1} parent=11 // pred_check
          %p404 = pneg %p263
        $region50: #{tpu_custom_call.1} parent=11 // pred_check_branch
          %406 = sbr.rel (%p404) target = $region52
        $region51: #{tpu_custom_call.1} parent=11 // pred_region
          _
        $region52: #{tpu_custom_call.1} parent=11 // pred_fallthru
          _
        // Predicated region
        $region53: #{tpu_custom_call.1} parent=11 // pred_check
          %p407 = pneg %p284
        $region54: #{tpu_custom_call.1} parent=11 // pred_check_branch
          %409 = sbr.rel (%p407) target = $region56
        $region55: #{tpu_custom_call.1} parent=11 // pred_region
          _
        $region56: #{tpu_custom_call.1} parent=11 // pred_fallthru
          _
      $region12: #{tpu_custom_call.1} parent=5 // pred_fallthru
        _
      %p410 = scmp.lt.s32.totalorder %s27, 2
      // Predicated region
      $region57: #{tpu_custom_call.1} parent=5 // pred_check
        %p411 = pneg %p410
      $region58: #{tpu_custom_call.1} parent=5 // pred_check_branch
        %413 = sbr.rel (%p411) target = $region60
      $region59: #{tpu_custom_call.1} parent=5 // pred_region
        // Predicated region
        $region61: #{tpu_custom_call.1} parent=59 // pred_check
          %p414 = pneg %p47
        $region62: #{tpu_custom_call.1} parent=59 // pred_check_branch
          %416 = sbr.rel (%p414) target = $region64
        $region63: #{tpu_custom_call.1} parent=59 // pred_region
          %p417 = scmp.lt.s32.totalorder %s27, 1
          %s418 = scalar_select %p417, %s27, 1
          %s419 = smul.addr %s418, 96
          %s420 = smul.addr %s419, 8
          %s421 = scalar_lea.vmem %s0, %s420
        $region64: #{tpu_custom_call.1} parent=59 // pred_fallthru
          _
      $region60: #{tpu_custom_call.1} parent=5 // pred_fallthru
        _
      %p422 = scmp.le.s32.totalorder 1, %s27
      %p423 = scmp.lt.s32.totalorder %s27, 3
      %p424 = pnand %p422, %p423
      %p425 = pneg %p424
      // Predicated region
      $region65: #{tpu_custom_call.1} parent=5 // pred_check
        _
      $region66: #{tpu_custom_call.1} parent=5 // pred_check_branch
        %427 = sbr.rel (%p424) target = $region68
      $region67: #{tpu_custom_call.1} parent=5 // pred_region
        %s428 = ssub.s32 %s27, 1
        %p429 = scmp.lt.s32.totalorder %s32, 1
        %s430 = scalar_select %p429, %s32, 1
        %s431 = smul.addr %s430, 96
        %s432 = smul.addr %s431, 8
        %s433 = scalar_lea.vmem %s0, %s432
        %p434 = pneg %p53
        %p435 = pneg %p50
        %p436 = pneg %p74
        %p437 = pneg %p71
        %p438 = pneg %p95
        %p439 = pneg %p92
        %p440 = pneg %p116
        %p441 = pneg %p113
        %p442 = pneg %p137
        %p443 = pneg %p134
        %p444 = pneg %p158
        %p445 = pneg %p155
        %p446 = pneg %p179
        %p447 = pneg %p176
        %p448 = pneg %p200
        %p449 = pneg %p197
        %p450 = pneg %p221
        %p451 = pneg %p218
        %p452 = pneg %p242
        %p453 = pneg %p239
        %p454 = pneg %p263
        %p455 = pneg %p260
        %p456 = pneg %p284
        %p457 = pneg %p281
        %p458 = pneg %p310
        %p459 = pneg %p307
        %s460 = sand.u32 %s297, 1
        %s461 = scalar_lea.sflag [#allocation3], %s460
        %s462 = sand.u32 %s297, 1
        %s463 = smul.addr %s462, 8
        %s464 = scalar_lea.vmem [#allocation2], %s463
        %p465 = pneg %p336
        %p466 = pneg %p333
        %s467 = sand.u32 %s32, 1
        %s468 = scalar_lea.sflag [#allocation5], %s467
        %s469 = sand.u32 %s323, 1
        %s470 = smul.addr %s469, 8
        %s471 = scalar_lea.vmem [#allocation4], %s470
        %p472 = pneg %p362
        %p473 = pneg %p359
        %s474 = sand.u32 %s32, 1
        %s475 = scalar_lea.sflag [#allocation5], %s474
        %s476 = sand.u32 %s349, 1
        %s477 = smul.addr %s476, 8
        %s478 = scalar_lea.vmem [#allocation6], %s477
        %p479 = scmp.lt.s32.totalorder %s32, 1
        %s480 = scalar_select %p479, %s32, 1
        %s481 = smul.addr %s480, 96
        %s482 = smul.addr %s481, 8
        %s483 = scalar_lea.vmem %s0, %s482
        %v485 = vld [vmem:[%s483] sm:$0xff]
        %v486 = vld [vmem:[%s483 + $0x8] sm:$0xff]
        %v487 = vld [vmem:[%s483 + $0x10] sm:$0xff]
        %v488 = vld [vmem:[%s483 + $0x18] sm:$0xff]
        %v489 = vld [vmem:[%s483 + $0x20] sm:$0xff]
        %v490 = vld [vmem:[%s483 + $0x28] sm:$0xff]
        %v491 = vld [vmem:[%s483 + $0x30] sm:$0xff]
        %v492 = vld [vmem:[%s483 + $0x38] sm:$0xff]
        %v493 = vld [vmem:[%s483 + $0x40] sm:$0xff]
        %v494 = vld [vmem:[%s483 + $0x48] sm:$0xff]
        %v495 = vld [vmem:[%s483 + $0x50] sm:$0xff]
        %v496 = vld [vmem:[%s483 + $0x58] sm:$0xff]
        %v497 = vld [vmem:[%s483 + $0x60] sm:$0xff]
        %v498 = vld [vmem:[%s483 + $0x68] sm:$0xff]
        %v499 = vld [vmem:[%s483 + $0x70] sm:$0xff]
        %v500 = vld [vmem:[%s483 + $0x78] sm:$0xff]
        %v501 = vld [vmem:[%s483 + $0x80] sm:$0xff]
        %v502 = vld [vmem:[%s483 + $0x88] sm:$0xff]
        %v503 = vld [vmem:[%s483 + $0x90] sm:$0xff]
        %v504 = vld [vmem:[%s483 + $0x98] sm:$0xff]
        %v505 = vld [vmem:[%s483 + $0xa0] sm:$0xff]
        %v506 = vld [vmem:[%s483 + $0xa8] sm:$0xff]
        %v507 = vld [vmem:[%s483 + $0xb0] sm:$0xff]
        %v508 = vld [vmem:[%s483 + $0xb8] sm:$0xff]
        %v509 = vld [vmem:[%s483 + $0xc0] sm:$0xff]
        %v510 = vld [vmem:[%s483 + $0xc8] sm:$0xff]
        %v511 = vld [vmem:[%s483 + $0xd0] sm:$0xff]
        %v512 = vld [vmem:[%s483 + $0xd8] sm:$0xff]
        %v513 = vld [vmem:[%s483 + $0xe0] sm:$0xff]
        %v514 = vld [vmem:[%s483 + $0xe8] sm:$0xff]
        %v515 = vld [vmem:[%s483 + $0xf0] sm:$0xff]
        %v516 = vld [vmem:[%s483 + $0xf8] sm:$0xff]
        %v517 = vld [vmem:[%s483 + $0x100] sm:$0xff]
        %v518 = vld [vmem:[%s483 + $0x108] sm:$0xff]
        %v519 = vld [vmem:[%s483 + $0x110] sm:$0xff]
        %v520 = vld [vmem:[%s483 + $0x118] sm:$0xff]
        %v521 = vld [vmem:[%s483 + $0x120] sm:$0xff]
        %v522 = vld [vmem:[%s483 + $0x128] sm:$0xff]
        %v523 = vld [vmem:[%s483 + $0x130] sm:$0xff]
        %v524 = vld [vmem:[%s483 + $0x138] sm:$0xff]
        %v525 = vld [vmem:[%s483 + $0x140] sm:$0xff]
        %v526 = vld [vmem:[%s483 + $0x148] sm:$0xff]
        %v527 = vld [vmem:[%s483 + $0x150] sm:$0xff]
        %v528 = vld [vmem:[%s483 + $0x158] sm:$0xff]
        %v529 = vld [vmem:[%s483 + $0x160] sm:$0xff]
        %v530 = vld [vmem:[%s483 + $0x168] sm:$0xff]
        %v531 = vld [vmem:[%s483 + $0x170] sm:$0xff]
        %v532 = vld [vmem:[%s483 + $0x178] sm:$0xff]
        %v533 = vld [vmem:[%s483 + $0x180] sm:$0xff]
        %v534 = vld [vmem:[%s483 + $0x188] sm:$0xff]
        %v535 = vld [vmem:[%s483 + $0x190] sm:$0xff]
        %v536 = vld [vmem:[%s483 + $0x198] sm:$0xff]
        %v537 = vld [vmem:[%s483 + $0x1a0] sm:$0xff]
        %v538 = vld [vmem:[%s483 + $0x1a8] sm:$0xff]
        %v539 = vld [vmem:[%s483 + $0x1b0] sm:$0xff]
        %v540 = vld [vmem:[%s483 + $0x1b8] sm:$0xff]
        %v541 = vld [vmem:[%s483 + $0x1c0] sm:$0xff]
        %v542 = vld [vmem:[%s483 + $0x1c8] sm:$0xff]
        %v543 = vld [vmem:[%s483 + $0x1d0] sm:$0xff]
        %v544 = vld [vmem:[%s483 + $0x1d8] sm:$0xff]
        %v545 = vld [vmem:[%s483 + $0x1e0] sm:$0xff]
        %v546 = vld [vmem:[%s483 + $0x1e8] sm:$0xff]
        %v547 = vld [vmem:[%s483 + $0x1f0] sm:$0xff]
        %v548 = vld [vmem:[%s483 + $0x1f8] sm:$0xff]
        %v549 = vld [vmem:[%s483 + $0x200] sm:$0xff]
        %v550 = vld [vmem:[%s483 + $0x208] sm:$0xff]
        %v551 = vld [vmem:[%s483 + $0x210] sm:$0xff]
        %v552 = vld [vmem:[%s483 + $0x218] sm:$0xff]
        %v553 = vld [vmem:[%s483 + $0x220] sm:$0xff]
        %v554 = vld [vmem:[%s483 + $0x228] sm:$0xff]
        %v555 = vld [vmem:[%s483 + $0x230] sm:$0xff]
        %v556 = vld [vmem:[%s483 + $0x238] sm:$0xff]
        %v557 = vld [vmem:[%s483 + $0x240] sm:$0xff]
        %v558 = vld [vmem:[%s483 + $0x248] sm:$0xff]
        %v559 = vld [vmem:[%s483 + $0x250] sm:$0xff]
        %v560 = vld [vmem:[%s483 + $0x258] sm:$0xff]
        %v561 = vld [vmem:[%s483 + $0x260] sm:$0xff]
        %v562 = vld [vmem:[%s483 + $0x268] sm:$0xff]
        %v563 = vld [vmem:[%s483 + $0x270] sm:$0xff]
        %v564 = vld [vmem:[%s483 + $0x278] sm:$0xff]
        %v565 = vld [vmem:[%s483 + $0x280] sm:$0xff]
        %v566 = vld [vmem:[%s483 + $0x288] sm:$0xff]
        %v567 = vld [vmem:[%s483 + $0x290] sm:$0xff]
        %v568 = vld [vmem:[%s483 + $0x298] sm:$0xff]
        %v569 = vld [vmem:[%s483 + $0x2a0] sm:$0xff]
        %v570 = vld [vmem:[%s483 + $0x2a8] sm:$0xff]
        %v571 = vld [vmem:[%s483 + $0x2b0] sm:$0xff]
        %v572 = vld [vmem:[%s483 + $0x2b8] sm:$0xff]
        %v573 = vld [vmem:[%s483 + $0x2c0] sm:$0xff]
        %v574 = vld [vmem:[%s483 + $0x2c8] sm:$0xff]
        %v575 = vld [vmem:[%s483 + $0x2d0] sm:$0xff]
        %v576 = vld [vmem:[%s483 + $0x2d8] sm:$0xff]
        %v577 = vld [vmem:[%s483 + $0x2e0] sm:$0xff]
        %v578 = vld [vmem:[%s483 + $0x2e8] sm:$0xff]
        %v579 = vld [vmem:[%s483 + $0x2f0] sm:$0xff]
        %v580 = vld [vmem:[%s483 + $0x2f8] sm:$0xff]
        %v581 = vpack.c.bf16 %v486, %v485
        %v582 = vpack.c.bf16 %v488, %v487
        %v583 = vpack.c.bf16 %v490, %v489
        %v584 = vpack.c.bf16 %v492, %v491
        %v585 = vpack.c.bf16 %v494, %v493
        %v586 = vpack.c.bf16 %v496, %v495
        %v587 = vpack.c.bf16 %v498, %v497
        %v588 = vpack.c.bf16 %v500, %v499
        %v589 = vpack.c.bf16 %v502, %v501
        %v590 = vpack.c.bf16 %v504, %v503
        %v591 = vpack.c.bf16 %v506, %v505
        %v592 = vpack.c.bf16 %v508, %v507
        %v593 = vpack.c.bf16 %v510, %v509
        %v594 = vpack.c.bf16 %v512, %v511
        %v595 = vpack.c.bf16 %v514, %v513
        %v596 = vpack.c.bf16 %v516, %v515
        %v597 = vpack.c.bf16 %v518, %v517
        %v598 = vpack.c.bf16 %v520, %v519
        %v599 = vpack.c.bf16 %v522, %v521
        %v600 = vpack.c.bf16 %v524, %v523
        %v601 = vpack.c.bf16 %v526, %v525
        %v602 = vpack.c.bf16 %v528, %v527
        %v603 = vpack.c.bf16 %v530, %v529
        %v604 = vpack.c.bf16 %v532, %v531
        %v605 = vpack.c.bf16 %v534, %v533
        %v606 = vpack.c.bf16 %v536, %v535
        %v607 = vpack.c.bf16 %v538, %v537
        %v608 = vpack.c.bf16 %v540, %v539
        %v609 = vpack.c.bf16 %v542, %v541
        %v610 = vpack.c.bf16 %v544, %v543
        %v611 = vpack.c.bf16 %v546, %v545
        %v612 = vpack.c.bf16 %v548, %v547
        %v613 = vpack.c.bf16 %v550, %v549
        %v614 = vpack.c.bf16 %v552, %v551
        %v615 = vpack.c.bf16 %v554, %v553
        %v616 = vpack.c.bf16 %v556, %v555
        %v617 = vpack.c.bf16 %v558, %v557
        %v618 = vpack.c.bf16 %v560, %v559
        %v619 = vpack.c.bf16 %v562, %v561
        %v620 = vpack.c.bf16 %v564, %v563
        %v621 = vpack.c.bf16 %v566, %v565
        %v622 = vpack.c.bf16 %v568, %v567
        %v623 = vpack.c.bf16 %v570, %v569
        %v624 = vpack.c.bf16 %v572, %v571
        %v625 = vpack.c.bf16 %v574, %v573
        %v626 = vpack.c.bf16 %v576, %v575
        %v627 = vpack.c.bf16 %v578, %v577
        %v628 = vpack.c.bf16 %v580, %v579
        %v629 = vld [vmem:[%s1] sm:$0xff]
        %v630 = vld [vmem:[%s1 + $0x8] sm:$0xff]
        %v631 = vld [vmem:[%s1 + $0x10] sm:$0xff]
        %v632 = vld [vmem:[%s1 + $0x18] sm:$0xff]
        %v633 = vld [vmem:[%s1 + $0x20] sm:$0xff]
        %v634 = vld [vmem:[%s1 + $0x28] sm:$0xff]
        %v635 = vld [vmem:[%s1 + $0x30] sm:$0xff]
        %v636 = vld [vmem:[%s1 + $0x38] sm:$0xff]
        %v637 = vld [vmem:[%s1 + $0x40] sm:$0xff]
        %v638 = vld [vmem:[%s1 + $0x48] sm:$0xff]
        %v639 = vld [vmem:[%s1 + $0x50] sm:$0xff]
        %v640 = vld [vmem:[%s1 + $0x58] sm:$0xff]
        %v641 = vld [vmem:[%s1 + $0x60] sm:$0xff]
        %v642 = vld [vmem:[%s1 + $0x68] sm:$0xff]
        %v643 = vld [vmem:[%s1 + $0x70] sm:$0xff]
        %v644 = vld [vmem:[%s1 + $0x78] sm:$0xff]
        %v645 = vld [vmem:[%s1 + $0x80] sm:$0xff]
        %v646 = vld [vmem:[%s1 + $0x88] sm:$0xff]
        %v647 = vld [vmem:[%s2] sm:$0xff]
        %v648 = vld [vmem:[%s2 + $0x8] sm:$0xff]
        %v649 = vld [vmem:[%s2 + $0x10] sm:$0xff]
        %v650 = vld [vmem:[%s2 + $0x18] sm:$0xff]
        %v651 = vld [vmem:[%s2 + $0x20] sm:$0xff]
        %v652 = vld [vmem:[%s2 + $0x28] sm:$0xff]
        %654 = vset.pattern.permute.xlu0 0
        %655 = vperm.xlu0 %654, %v647
        %v656 = vpop.permute.xlu0 %655
        %659 = vset.pattern.permute.xlu0 0
        %660 = vperm.xlu0 %659, %v648
        %v661 = vpop.permute.xlu0 %660
        %664 = vset.pattern.permute.xlu0 0
        %665 = vperm.xlu0 %664, %v649
        %v666 = vpop.permute.xlu0 %665
        %669 = vset.pattern.permute.xlu0 0
        %670 = vperm.xlu0 %669, %v650
        %v671 = vpop.permute.xlu0 %670
        %674 = vset.pattern.permute.xlu0 0
        %675 = vperm.xlu0 %674, %v651
        %v676 = vpop.permute.xlu0 %675
        %679 = vset.pattern.permute.xlu0 0
        %680 = vperm.xlu0 %679, %v652
        %v681 = vpop.permute.xlu0 %680
        %v701 = vunpack.c.l.b16 %v629
        %v702 = vunpack.c.h.b16 %v629
        %v703 = vunpack.c.l.b16 %v630
        %v704 = vunpack.c.h.b16 %v630
        %v705 = vunpack.c.l.b16 %v631
        %v706 = vunpack.c.h.b16 %v631
        %v707 = vunpack.c.l.b16 %v632
        %v708 = vunpack.c.h.b16 %v632
        %v709 = vunpack.c.l.b16 %v633
        %v710 = vunpack.c.h.b16 %v633
        %v711 = vunpack.c.l.b16 %v634
        %v712 = vunpack.c.h.b16 %v634
        %v713 = vunpack.c.l.b16 %v635
        %v714 = vunpack.c.h.b16 %v635
        %v715 = vunpack.c.l.b16 %v636
        %v716 = vunpack.c.h.b16 %v636
        %v717 = vunpack.c.l.b16 %v637
        %v718 = vunpack.c.h.b16 %v637
        %v719 = vunpack.c.l.b16 %v638
        %v720 = vunpack.c.h.b16 %v638
        %v721 = vunpack.c.l.b16 %v639
        %v722 = vunpack.c.h.b16 %v639
        %v723 = vunpack.c.l.b16 %v640
        %v724 = vunpack.c.h.b16 %v640
        %v725 = vunpack.c.l.b16 %v641
        %v726 = vunpack.c.h.b16 %v641
        %v727 = vunpack.c.l.b16 %v642
        %v728 = vunpack.c.h.b16 %v642
        %v729 = vunpack.c.l.b16 %v643
        %v730 = vunpack.c.h.b16 %v643
        %v731 = vunpack.c.l.b16 %v644
        %v732 = vunpack.c.h.b16 %v644
        %v733 = vunpack.c.l.b16 %v645
        %v734 = vunpack.c.h.b16 %v645
        %v735 = vunpack.c.l.b16 %v646
        %v736 = vunpack.c.h.b16 %v646
        %v737 = vpack.c.b16 %v707, %v701
        %v738 = vpack.c.b16 %v708, %v702
        %v739 = vpack.c.b16 %v709, %v703
        %v740 = vpack.c.b16 %v710, %v704
        %v741 = vpack.c.b16 %v711, %v705
        %v742 = vpack.c.b16 %v712, %v706
        %v743 = vpack.c.b16 %v719, %v713
        %v744 = vpack.c.b16 %v720, %v714
        %v745 = vpack.c.b16 %v721, %v715
        %v746 = vpack.c.b16 %v722, %v716
        %v747 = vpack.c.b16 %v723, %v717
        %v748 = vpack.c.b16 %v724, %v718
        %v749 = vpack.c.b16 %v731, %v725
        %v750 = vpack.c.b16 %v732, %v726
        %v751 = vpack.c.b16 %v733, %v727
        %v752 = vpack.c.b16 %v734, %v728
        %v753 = vpack.c.b16 %v735, %v729
        %v754 = vpack.c.b16 %v736, %v730
        %773 = vmatprep.subr.bf16.mxu0 0
        %774 = vmatpush1.bf16.msra.mxu0 %v588
        %775 = vmatprep.subr.bf16.mxu0 0
        %776 = vmatpush1.bf16.msra.mxu0 %v587
        %777 = vmatprep.subr.bf16.mxu0 0
        %778 = vmatpush1.bf16.msra.mxu0 %v586
        %779 = vmatprep.subr.bf16.mxu0 0
        %780 = vmatpush1.bf16.msra.mxu0 %v585
        %781 = vmatprep.subr.bf16.mxu0 0
        %782 = vmatpush1.bf16.msra.mxu0 %v584
        %783 = vmatprep.subr.bf16.mxu0 0
        %784 = vmatpush1.bf16.msra.mxu0 %v583
        %785 = vmatprep.subr.bf16.mxu0 0
        %786 = vmatpush1.bf16.msra.mxu0 %v582
        %787 = vmatprep.subr.bf16.mxu0 0
        %788 = vmatpush1.bf16.msra.mxu0 %v581
        %789 = vmatprep.subr.bf16.mxu0 0
        %790 = vmatpush2.bf16.msra.mxu0 %v596
        %791 = vmatprep.subr.bf16.mxu0 0
        %792 = vmatpush2.bf16.msra.mxu0 %v595
        %793 = vmatprep.subr.bf16.mxu0 0
        %794 = vmatpush2.bf16.msra.mxu0 %v594
        %795 = vmatprep.subr.bf16.mxu0 0
        %796 = vmatpush2.bf16.msra.mxu0 %v593
        %797 = vmatprep.subr.bf16.mxu0 0
        %798 = vmatpush2.bf16.msra.mxu0 %v592
        %799 = vmatprep.subr.bf16.mxu0 0
        %800 = vmatpush2.bf16.msra.mxu0 %v591
        %801 = vmatprep.subr.bf16.mxu0 0
        %802 = vmatpush2.bf16.msra.mxu0 %v590
        %803 = vmatprep.subr.bf16.mxu0 0
        %804 = vmatpush2.bf16.msra.mxu0 %v589
        %805 = vmatprep.mubr.bf16.mxu0 %v738
        %806 = vmatmul.mubr.bf16.gmra.mxu0 %v737
        %v807 = vpop.f32.mrf.mxu0
        %v808 = vadd.f32 %v656, %v807
        %v809 = vpop.f32.mrf.mxu0
        %v810 = vpop.f32.mrf.mxu0
        %v811 = vadd.f32 %v661, %v810
        %v812 = vpop.f32.mrf.mxu0
        %813 = vmatprep.mubr.bf16.mxu0 %v744
        %814 = vmatmul.mubr.bf16.gmra.mxu0 %v743
        %v815 = vpop.f32.mrf.mxu0
        %v816 = vadd.f32 %v666, %v815
        %v817 = vpop.f32.mrf.mxu0
        %v818 = vpop.f32.mrf.mxu0
        %v819 = vadd.f32 %v671, %v818
        %v820 = vpop.f32.mrf.mxu0
        %821 = vmatprep.mubr.bf16.mxu0 %v750
        %822 = vmatmul.mubr.bf16.gmra.mxu0 %v749
        %v823 = vpop.f32.mrf.mxu0
        %v824 = vadd.f32 %v676, %v823
        %v825 = vpop.f32.mrf.mxu0
        %v826 = vpop.f32.mrf.mxu0
        %v827 = vadd.f32 %v681, %v826
        %v828 = vpop.f32.mrf.mxu0
        %829 = vdwg.mxu0
        %830 = vmatprep.subr.bf16.mxu0 0
        %831 = vmatpush1.bf16.msra.mxu0 %v604
        %832 = vmatprep.subr.bf16.mxu0 0
        %833 = vmatpush1.bf16.msra.mxu0 %v603
        %834 = vmatprep.subr.bf16.mxu0 0
        %835 = vmatpush1.bf16.msra.mxu0 %v602
        %836 = vmatprep.subr.bf16.mxu0 0
        %837 = vmatpush1.bf16.msra.mxu0 %v601
        %838 = vmatprep.subr.bf16.mxu0 0
        %839 = vmatpush1.bf16.msra.mxu0 %v600
        %840 = vmatprep.subr.bf16.mxu0 0
        %841 = vmatpush1.bf16.msra.mxu0 %v599
        %842 = vmatprep.subr.bf16.mxu0 0
        %843 = vmatpush1.bf16.msra.mxu0 %v598
        %844 = vmatprep.subr.bf16.mxu0 0
        %845 = vmatpush1.bf16.msra.mxu0 %v597
        %846 = vmatprep.subr.bf16.mxu0 0
        %847 = vmatpush2.bf16.msra.mxu0 %v612
        %848 = vmatprep.subr.bf16.mxu0 0
        %849 = vmatpush2.bf16.msra.mxu0 %v611
        %850 = vmatprep.subr.bf16.mxu0 0
        %851 = vmatpush2.bf16.msra.mxu0 %v610
        %852 = vmatprep.subr.bf16.mxu0 0
        %853 = vmatpush2.bf16.msra.mxu0 %v609
        %854 = vmatprep.subr.bf16.mxu0 0
        %855 = vmatpush2.bf16.msra.mxu0 %v608
        %856 = vmatprep.subr.bf16.mxu0 0
        %857 = vmatpush2.bf16.msra.mxu0 %v607
        %858 = vmatprep.subr.bf16.mxu0 0
        %859 = vmatpush2.bf16.msra.mxu0 %v606
        %860 = vmatprep.subr.bf16.mxu0 0
        %861 = vmatpush2.bf16.msra.mxu0 %v605
        %862 = vmatprep.mubr.bf16.mxu0 %v740
        %863 = vmatmul.mubr.bf16.gmra.mxu0 %v739
        %v864 = vpop.f32.mrf.mxu0
        %v865 = vadd.f32 %v808, %v864
        %v866 = vpop.f32.mrf.mxu0
        %v867 = vpop.f32.mrf.mxu0
        %v868 = vadd.f32 %v811, %v867
        %v869 = vpop.f32.mrf.mxu0
        %870 = vmatprep.mubr.bf16.mxu0 %v746
        %871 = vmatmul.mubr.bf16.gmra.mxu0 %v745
        %v872 = vpop.f32.mrf.mxu0
        %v873 = vadd.f32 %v816, %v872
        %v874 = vpop.f32.mrf.mxu0
        %v875 = vpop.f32.mrf.mxu0
        %v876 = vadd.f32 %v819, %v875
        %v877 = vpop.f32.mrf.mxu0
        %878 = vmatprep.mubr.bf16.mxu0 %v752
        %879 = vmatmul.mubr.bf16.gmra.mxu0 %v751
        %v880 = vpop.f32.mrf.mxu0
        %v881 = vadd.f32 %v824, %v880
        %v882 = vpop.f32.mrf.mxu0
        %v883 = vpop.f32.mrf.mxu0
        %v884 = vadd.f32 %v827, %v883
        %v885 = vpop.f32.mrf.mxu0
        %886 = vdwg.mxu0
        %887 = vmatprep.subr.bf16.mxu0 0
        %888 = vmatpush1.bf16.msra.mxu0 %v620
        %889 = vmatprep.subr.bf16.mxu0 0
        %890 = vmatpush1.bf16.msra.mxu0 %v619
        %891 = vmatprep.subr.bf16.mxu0 0
        %892 = vmatpush1.bf16.msra.mxu0 %v618
        %893 = vmatprep.subr.bf16.mxu0 0
        %894 = vmatpush1.bf16.msra.mxu0 %v617
        %895 = vmatprep.subr.bf16.mxu0 0
        %896 = vmatpush1.bf16.msra.mxu0 %v616
        %897 = vmatprep.subr.bf16.mxu0 0
        %898 = vmatpush1.bf16.msra.mxu0 %v615
        %899 = vmatprep.subr.bf16.mxu0 0
        %900 = vmatpush1.bf16.msra.mxu0 %v614
        %901 = vmatprep.subr.bf16.mxu0 0
        %902 = vmatpush1.bf16.msra.mxu0 %v613
        %903 = vmatprep.subr.bf16.mxu0 0
        %904 = vmatpush2.bf16.msra.mxu0 %v628
        %905 = vmatprep.subr.bf16.mxu0 0
        %906 = vmatpush2.bf16.msra.mxu0 %v627
        %907 = vmatprep.subr.bf16.mxu0 0
        %908 = vmatpush2.bf16.msra.mxu0 %v626
        %909 = vmatprep.subr.bf16.mxu0 0
        %910 = vmatpush2.bf16.msra.mxu0 %v625
        %911 = vmatprep.subr.bf16.mxu0 0
        %912 = vmatpush2.bf16.msra.mxu0 %v624
        %913 = vmatprep.subr.bf16.mxu0 0
        %914 = vmatpush2.bf16.msra.mxu0 %v623
        %915 = vmatprep.subr.bf16.mxu0 0
        %916 = vmatpush2.bf16.msra.mxu0 %v622
        %917 = vmatprep.subr.bf16.mxu0 0
        %918 = vmatpush2.bf16.msra.mxu0 %v621
        %919 = vmatprep.mubr.bf16.mxu0 %v742
        %920 = vmatmul.mubr.bf16.gmra.mxu0 %v741
        %v921 = vpop.f32.mrf.mxu0
        %v922 = vadd.f32 %v865, %v921
        %v923 = vpop.f32.mrf.mxu0
        %v924 = vpop.f32.mrf.mxu0
        %v925 = vadd.f32 %v868, %v924
        %v926 = vpop.f32.mrf.mxu0
        %927 = vmatprep.mubr.bf16.mxu0 %v748
        %928 = vmatmul.mubr.bf16.gmra.mxu0 %v747
        %v929 = vpop.f32.mrf.mxu0
        %v930 = vadd.f32 %v873, %v929
        %v931 = vpop.f32.mrf.mxu0
        %v932 = vpop.f32.mrf.mxu0
        %v933 = vadd.f32 %v876, %v932
        %v934 = vpop.f32.mrf.mxu0
        %935 = vmatprep.mubr.bf16.mxu0 %v754
        %936 = vmatmul.mubr.bf16.gmra.mxu0 %v753
        %v937 = vpop.f32.mrf.mxu0
        %v938 = vadd.f32 %v881, %v937
        %v939 = vpop.f32.mrf.mxu0
        %v940 = vpop.f32.mrf.mxu0
        %v941 = vadd.f32 %v884, %v940
        %v942 = vpop.f32.mrf.mxu0
        %943 = vdwg.mxu0
        %v944 = vmax.f32 %v922, 0.0
        %v945 = vmax.f32 %v925, 0.0
        %v946 = vmax.f32 %v930, 0.0
        %v947 = vmax.f32 %v933, 0.0
        %v948 = vmax.f32 %v938, 0.0
        %v949 = vmax.f32 %v941, 0.0
        %v950 = vpack.c.bf16 %v945, %v944
        %v951 = vpack.c.bf16 %v947, %v946
        %v952 = vpack.c.bf16 %v949, %v948
        %v953 = vld [vmem:[%s5] sm:$0xff]
        %v954 = vld [vmem:[%s5 + $0x8] sm:$0xff]
        %v955 = vld [vmem:[%s5 + $0x10] sm:$0xff]
        %v956 = vld [vmem:[%s5 + $0x18] sm:$0xff]
        %v957 = vld [vmem:[%s5 + $0x20] sm:$0xff]
        %v958 = vld [vmem:[%s5 + $0x28] sm:$0xff]
        %v959 = vld [vmem:[%s5 + $0x30] sm:$0xff]
        %v960 = vld [vmem:[%s5 + $0x38] sm:$0xff]
        %vm961 = vcmask 523264
        %v963 = vsel %vm961, %v944, 0
        %v966 = vsel %vm961, %v945, 0
        %v969 = vsel %vm961, %v946, 0
        %v972 = vsel %vm961, %v947, 0
        %v975 = vsel %vm961, %v948, 0
        %v978 = vsel %vm961, %v949, 0
        %980 = vmatprep.subr.mxu0 0.0
        %981 = vmatpush1.msra.mxu0 0.0
        %982 = vmatprep.subr.mxu0 0.0
        %983 = vmatpush1.msra.mxu0 0.0
        %984 = vmatprep.subr.mxu0 0.0
        %985 = vmatpush1.msra.mxu0 0.0
        %986 = vmatprep.subr.mxu0 0.0
        %987 = vmatpush1.msra.mxu0 0.0
        %988 = vmatprep.subr.mxu0 0.0
        %989 = vmatpush1.msra.mxu0 0.0
        %990 = vmatprep.subr.mxu0 0.0
        %991 = vmatpush1.msra.mxu0 0.0
        %992 = vmatprep.subr.mxu0 0.0
        %993 = vmatpush1.msra.mxu0 0.0
        %994 = vmatprep.subr.mxu0 0.0
        %995 = vmatpush1.msra.mxu0 0.0
        %996 = vmatprep.subr.mxu0 0.0
        %997 = vmatpush1.msra.mxu0 %v960
        %998 = vmatprep.subr.mxu0 0.0
        %999 = vmatpush1.msra.mxu0 %v959
        %1000 = vmatprep.subr.mxu0 0.0
        %1001 = vmatpush1.msra.mxu0 %v958
        %1002 = vmatprep.subr.mxu0 0.0
        %1003 = vmatpush1.msra.mxu0 %v957
        %1004 = vmatprep.subr.mxu0 0.0
        %1005 = vmatpush1.msra.mxu0 %v956
        %1006 = vmatprep.subr.mxu0 0.0
        %1007 = vmatpush1.msra.mxu0 %v955
        %1008 = vmatprep.subr.mxu0 0.0
        %1009 = vmatpush1.msra.mxu0 %v954
        %1010 = vmatprep.subr.mxu0 0.0
        %1011 = vmatpush1.msra.mxu0 %v953
        %1012 = vmatprep.subr.mxu0 0.0
        %1013 = vmatpush2.msra.mxu0 0.0
        %1014 = vmatprep.subr.mxu0 0.0
        %1015 = vmatpush2.msra.mxu0 0.0
        %1016 = vmatprep.subr.mxu0 0.0
        %1017 = vmatpush2.msra.mxu0 0.0
        %1018 = vmatprep.subr.mxu0 0.0
        %1019 = vmatpush2.msra.mxu0 0.0
        %1020 = vmatprep.subr.mxu0 0.0
        %1021 = vmatpush2.msra.mxu0 0.0
        %1022 = vmatprep.subr.mxu0 0.0
        %1023 = vmatpush2.msra.mxu0 0.0
        %1024 = vmatprep.subr.mxu0 0.0
        %1025 = vmatpush2.msra.mxu0 0.0
        %1026 = vmatprep.subr.mxu0 0.0
        %1027 = vmatpush2.msra.mxu0 0.0
        %1028 = vmatprep.subr.mxu0 0.0
        %1029 = vmatpush2.msra.mxu0 0.0
        %1030 = vmatprep.subr.mxu0 0.0
        %1031 = vmatpush2.msra.mxu0 0.0
        %1032 = vmatprep.subr.mxu0 0.0
        %1033 = vmatpush2.msra.mxu0 0.0
        %1034 = vmatprep.subr.mxu0 0.0
        %1035 = vmatpush2.msra.mxu0 0.0
        %1036 = vmatprep.subr.mxu0 0.0
        %1037 = vmatpush2.msra.mxu0 0.0
        %1038 = vmatprep.subr.mxu0 0.0
        %1039 = vmatpush2.msra.mxu0 0.0
        %1040 = vmatprep.subr.mxu0 0.0
        %1041 = vmatpush2.msra.mxu0 0.0
        %1042 = vmatprep.subr.mxu0 0.0
        %1043 = vmatpush2.msra.mxu0 0.0
        %1044 = vmatprep.mubr.f32.mxu0 0.0
        %1045 = vmatmul.mubr.f32.gmra.mxu0 %v963
        %v1046 = vpop.f32.mrf.mxu0
        %v1047 = vadd.f32 0.0, %v1046
        %v1048 = vpop.f32.mrf.mxu0
        %1049 = vmatprep.mubr.f32.mxu0 0.0
        %1050 = vmatmul.mubr.f32.gmra.mxu0 %v966
        %v1051 = vpop.f32.mrf.mxu0
        %v1052 = vadd.f32 0.0, %v1051
        %v1053 = vpop.f32.mrf.mxu0
        %1054 = vmatprep.mubr.f32.mxu0 0.0
        %1055 = vmatmul.mubr.f32.gmra.mxu0 %v969
        %v1056 = vpop.f32.mrf.mxu0
        %v1057 = vadd.f32 0.0, %v1056
        %v1058 = vpop.f32.mrf.mxu0
        %1059 = vmatprep.mubr.f32.mxu0 0.0
        %1060 = vmatmul.mubr.f32.gmra.mxu0 %v972
        %v1061 = vpop.f32.mrf.mxu0
        %v1062 = vadd.f32 0.0, %v1061
        %v1063 = vpop.f32.mrf.mxu0
        %1064 = vmatprep.mubr.f32.mxu0 0.0
        %1065 = vmatmul.mubr.f32.gmra.mxu0 %v975
        %v1066 = vpop.f32.mrf.mxu0
        %v1067 = vadd.f32 0.0, %v1066
        %v1068 = vpop.f32.mrf.mxu0
        %1069 = vmatprep.mubr.f32.mxu0 0.0
        %1070 = vmatmul.mubr.f32.gmra.mxu0 %v978
        %v1071 = vpop.f32.mrf.mxu0
        %v1072 = vadd.f32 0.0, %v1071
        %v1073 = vpop.f32.mrf.mxu0
        %1074 = vdwg.mxu0
        %1075 = vxpose.xlu0.b32.start [1/16] %v1047, 128
        %1076 = vxpose.xlu0.b32.cont [2/16] %v1052, 128
        %1077 = vxpose.xlu0.b32.cont [3/16] %v1057, 128
        %1078 = vxpose.xlu0.b32.cont [4/16] %v1062, 128
        %1079 = vxpose.xlu0.b32.cont [5/16] %v1067, 128
        %1080 = vxpose.xlu0.b32.cont [6/16] %v1072, 128
        %1081 = vxpose.xlu0.b32.cont [7/16] 0.0, 128
        %1082 = vxpose.xlu0.b32.cont [8/16] 0.0, 128
        %1083 = vxpose.xlu0.b32.cont [9/16] 0.0, 128
        %1084 = vxpose.xlu0.b32.cont [10/16] 0.0, 128
        %1085 = vxpose.xlu0.b32.cont [11/16] 0.0, 128
        %1086 = vxpose.xlu0.b32.cont [12/16] 0.0, 128
        %1087 = vxpose.xlu0.b32.cont [13/16] 0.0, 128
        %1088 = vxpose.xlu0.b32.cont [14/16] 0.0, 128
        %1089 = vxpose.xlu0.b32.cont [15/16] 0.0, 128
        %1090 = vxpose.xlu0.b32.end [16/16] 0.0, 128
        %v1091 = vpop.trf.xlu0
        %v1092 = vpop.trf.xlu0
        %v1093 = vpop.trf.xlu0
        %v1094 = vpop.trf.xlu0
        %v1095 = vpop.trf.xlu0
        %v1096 = vpop.trf.xlu0
        %v1097 = vpop.trf.xlu0
        %v1098 = vpop.trf.xlu0
        %v1099 = vpop.trf.xlu0
        %v1100 = vpop.trf.xlu0
        %v1101 = vpop.trf.xlu0
        %v1102 = vpop.trf.xlu0
        %v1103 = vpop.trf.xlu0
        %v1104 = vpop.trf.xlu0
        %v1105 = vpop.trf.xlu0
        %v1106 = vpop.trf.xlu0
        %v1107 = vld [vmem:[%s3] sm:$0xf]
        %v1108 = vld [vmem:[%s3 + $0x4] sm:$0xf]
        %v1109 = vld [vmem:[%s3 + $0x8] sm:$0xf]
        %v1110 = vld [vmem:[%s3 + $0xc] sm:$0xf]
        %v1111 = vld [vmem:[%s3 + $0x10] sm:$0xf]
        %v1112 = vld [vmem:[%s3 + $0x14] sm:$0xf]
        %v1113 = vld [vmem:[%s3 + $0x18] sm:$0xf]
        %v1114 = vld [vmem:[%s3 + $0x1c] sm:$0xf]
        %v1115 = vld [vmem:[%s3 + $0x20] sm:$0xf]
        %v1116 = vld [vmem:[%s3 + $0x24] sm:$0xf]
        %v1117 = vld [vmem:[%s3 + $0x28] sm:$0xf]
        %v1118 = vld [vmem:[%s3 + $0x2c] sm:$0xf]
        %v1119 = vld [vmem:[%s6] sm:$0xff]
        %v1120 = vld [vmem:[%s6 + $0x8] sm:$0xff]
        %v1121 = vld [vmem:[%s6 + $0x10] sm:$0xff]
        %v1122 = vld [vmem:[%s6 + $0x18] sm:$0xff]
        %v1123 = vld [vmem:[%s6 + $0x20] sm:$0xff]
        %v1124 = vld [vmem:[%s6 + $0x28] sm:$0xff]
        %v1125 = vld [vmem:[%s6 + $0x30] sm:$0xff]
        %v1126 = vld [vmem:[%s6 + $0x38] sm:$0xff]
        %v1127 = vld [vmem:[%s6 + $0x40] sm:$0xff]
        %v1128 = vld [vmem:[%s6 + $0x48] sm:$0xff]
        %v1129 = vld [vmem:[%s6 + $0x50] sm:$0xff]
        %v1130 = vld [vmem:[%s6 + $0x58] sm:$0xff]
        %v1143 = vunpack.c.l.b16 %v1107
        %v1144 = vunpack.c.l.b16 %v1108
        %v1145 = vunpack.c.l.b16 %v1109
        %v1146 = vunpack.c.l.b16 %v1110
        %v1147 = vunpack.c.l.b16 %v1111
        %v1148 = vunpack.c.l.b16 %v1112
        %v1149 = vunpack.c.l.b16 %v1113
        %v1150 = vunpack.c.l.b16 %v1114
        %v1151 = vunpack.c.l.b16 %v1115
        %v1152 = vunpack.c.l.b16 %v1116
        %v1153 = vunpack.c.l.b16 %v1117
        %v1154 = vunpack.c.l.b16 %v1118
        %v1155 = vpack.c.b16 %v1144, %v1143
        %v1156 = vpack.c.b16 %v1146, %v1145
        %v1157 = vpack.c.b16 %v1148, %v1147
        %v1158 = vpack.c.b16 %v1150, %v1149
        %v1159 = vpack.c.b16 %v1152, %v1151
        %v1160 = vpack.c.b16 %v1154, %v1153
        %vm1161 = vcmask 392192
        %v1163 = vsel %vm1161, %v1155, 0
        %v1166 = vsel %vm1161, %v1156, 0
        %v1169 = vsel %vm1161, %v1157, 0
        %v1172 = vsel %vm1161, %v1158, 0
        %v1175 = vsel %vm1161, %v1159, 0
        %v1178 = vsel %vm1161, %v1160, 0
        %1180 = vmatprep.subr.bf16.mxu0 0
        %1181 = vmatpush1.bf16.msra.mxu0 0
        %1182 = vmatprep.subr.bf16.mxu0 0
        %1183 = vmatpush1.bf16.msra.mxu0 0
        %1184 = vmatprep.subr.bf16.mxu0 0
        %1185 = vmatpush1.bf16.msra.mxu0 0
        %1186 = vmatprep.subr.bf16.mxu0 0
        %1187 = vmatpush1.bf16.msra.mxu0 0
        %1188 = vmatprep.subr.bf16.mxu0 0
        %1189 = vmatpush1.bf16.msra.mxu0 0
        %1190 = vmatprep.subr.bf16.mxu0 0
        %1191 = vmatpush1.bf16.msra.mxu0 %v952
        %1192 = vmatprep.subr.bf16.mxu0 0
        %1193 = vmatpush1.bf16.msra.mxu0 %v951
        %1194 = vmatprep.subr.bf16.mxu0 0
        %1195 = vmatpush1.bf16.msra.mxu0 %v950
        %1196 = vmatprep.subr.bf16.mxu0 0
        %1197 = vmatpush2.bf16.msra.mxu0 0
        %1198 = vmatprep.subr.bf16.mxu0 0
        %1199 = vmatpush2.bf16.msra.mxu0 0
        %1200 = vmatprep.subr.bf16.mxu0 0
        %1201 = vmatpush2.bf16.msra.mxu0 0
        %1202 = vmatprep.subr.bf16.mxu0 0
        %1203 = vmatpush2.bf16.msra.mxu0 0
        %1204 = vmatprep.subr.bf16.mxu0 0
        %1205 = vmatpush2.bf16.msra.mxu0 0
        %1206 = vmatprep.subr.bf16.mxu0 0
        %1207 = vmatpush2.bf16.msra.mxu0 0
        %1208 = vmatprep.subr.bf16.mxu0 0
        %1209 = vmatpush2.bf16.msra.mxu0 0
        %1210 = vmatprep.subr.bf16.mxu0 0
        %1211 = vmatpush2.bf16.msra.mxu0 0
        %1212 = vmatprep.mubr.bf16.mxu0 0
        %1213 = vmatmul.mubr.bf16.gmra.mxu0 %v1163
        %v1214 = vpop.f32.mrf.mxu0
        %v1215 = vadd.f32 %v1119, %v1214
        %v1216 = vpop.f32.mrf.mxu0
        %v1217 = vpop.f32.mrf.mxu0
        %v1218 = vadd.f32 %v1120, %v1217
        %v1219 = vpop.f32.mrf.mxu0
        %1220 = vmatprep.mubr.bf16.mxu0 0
        %1221 = vmatmul.mubr.bf16.gmra.mxu0 %v1166
        %v1222 = vpop.f32.mrf.mxu0
        %v1223 = vadd.f32 %v1121, %v1222
        %v1224 = vpop.f32.mrf.mxu0
        %v1225 = vpop.f32.mrf.mxu0
        %v1226 = vadd.f32 %v1122, %v1225
        %v1227 = vpop.f32.mrf.mxu0
        %1228 = vmatprep.mubr.bf16.mxu0 0
        %1229 = vmatmul.mubr.bf16.gmra.mxu0 %v1169
        %v1230 = vpop.f32.mrf.mxu0
        %v1231 = vadd.f32 %v1123, %v1230
        %v1232 = vpop.f32.mrf.mxu0
        %v1233 = vpop.f32.mrf.mxu0
        %v1234 = vadd.f32 %v1124, %v1233
        %v1235 = vpop.f32.mrf.mxu0
        %1236 = vmatprep.mubr.bf16.mxu0 0
        %1237 = vmatmul.mubr.bf16.gmra.mxu0 %v1172
        %v1238 = vpop.f32.mrf.mxu0
        %v1239 = vadd.f32 %v1125, %v1238
        %v1240 = vpop.f32.mrf.mxu0
        %v1241 = vpop.f32.mrf.mxu0
        %v1242 = vadd.f32 %v1126, %v1241
        %v1243 = vpop.f32.mrf.mxu0
        %1244 = vmatprep.mubr.bf16.mxu0 0
        %1245 = vmatmul.mubr.bf16.gmra.mxu0 %v1175
        %v1246 = vpop.f32.mrf.mxu0
        %v1247 = vadd.f32 %v1127, %v1246
        %v1248 = vpop.f32.mrf.mxu0
        %v1249 = vpop.f32.mrf.mxu0
        %v1250 = vadd.f32 %v1128, %v1249
        %v1251 = vpop.f32.mrf.mxu0
        %1252 = vmatprep.mubr.bf16.mxu0 0
        %1253 = vmatmul.mubr.bf16.gmra.mxu0 %v1178
        %v1254 = vpop.f32.mrf.mxu0
        %v1255 = vadd.f32 %v1129, %v1254
        %v1256 = vpop.f32.mrf.mxu0
        %v1257 = vpop.f32.mrf.mxu0
        %v1258 = vadd.f32 %v1130, %v1257
        %v1259 = vpop.f32.mrf.mxu0
        %1260 = vdwg.mxu0
        %v1261 = vpack.c.bf16 %v1091, %v1091
        %v1262 = vld [vmem:[%s4] sm:$0xf]
        %v1263 = vld [vmem:[%s4 + $0x4] sm:$0xf]
        %v1264 = vld [vmem:[%s4 + $0x8] sm:$0xf]
        %v1265 = vld [vmem:[%s4 + $0xc] sm:$0xf]
        %v1266 = vld [vmem:[%s4 + $0x10] sm:$0xf]
        %v1267 = vld [vmem:[%s4 + $0x14] sm:$0xf]
        %v1268 = vld [vmem:[%s7] sm:$0xff]
        %v1275 = vunpack.c.l.b16 %v1262
        %v1276 = vunpack.c.l.b16 %v1263
        %v1277 = vunpack.c.l.b16 %v1264
        %v1278 = vunpack.c.l.b16 %v1265
        %v1279 = vunpack.c.l.b16 %v1266
        %v1280 = vunpack.c.l.b16 %v1267
        %v1281 = vpack.c.b16 %v1276, %v1275
        %v1282 = vpack.c.b16 %v1278, %v1277
        %v1283 = vpack.c.b16 %v1280, %v1279
        %v1288 = vsel %vm1161, %v1261, 0
        %1290 = vmatprep.subr.bf16.mxu0 0
        %1291 = vmatpush1.bf16.msra.mxu0 0
        %1292 = vmatprep.subr.bf16.mxu0 0
        %1293 = vmatpush1.bf16.msra.mxu0 0
        %1294 = vmatprep.subr.bf16.mxu0 0
        %1295 = vmatpush1.bf16.msra.mxu0 0
        %1296 = vmatprep.subr.bf16.mxu0 0
        %1297 = vmatpush1.bf16.msra.mxu0 0
        %1298 = vmatprep.subr.bf16.mxu0 0
        %1299 = vmatpush1.bf16.msra.mxu0 0
        %1300 = vmatprep.subr.bf16.mxu0 0
        %1301 = vmatpush1.bf16.msra.mxu0 %v1283
        %1302 = vmatprep.subr.bf16.mxu0 0
        %1303 = vmatpush1.bf16.msra.mxu0 %v1282
        %1304 = vmatprep.subr.bf16.mxu0 0
        %1305 = vmatpush1.bf16.msra.mxu0 %v1281
        %1306 = vmatprep.subr.bf16.mxu0 0
        %1307 = vmatpush2.bf16.msra.mxu0 0
        %1308 = vmatprep.subr.bf16.mxu0 0
        %1309 = vmatpush2.bf16.msra.mxu0 0
        %1310 = vmatprep.subr.bf16.mxu0 0
        %1311 = vmatpush2.bf16.msra.mxu0 0
        %1312 = vmatprep.subr.bf16.mxu0 0
        %1313 = vmatpush2.bf16.msra.mxu0 0
        %1314 = vmatprep.subr.bf16.mxu0 0
        %1315 = vmatpush2.bf16.msra.mxu0 0
        %1316 = vmatprep.subr.bf16.mxu0 0
        %1317 = vmatpush2.bf16.msra.mxu0 0
        %1318 = vmatprep.subr.bf16.mxu0 0
        %1319 = vmatpush2.bf16.msra.mxu0 0
        %1320 = vmatprep.subr.bf16.mxu0 0
        %1321 = vmatpush2.bf16.msra.mxu0 0
        %1322 = vmatprep.mubr.bf16.mxu0 0
        %1323 = vmatmul.mubr.bf16.gmra.mxu0 %v1288
        %v1324 = vpop.f32.mrf.mxu0
        %v1325 = vadd.f32 %v1268, %v1324
        %v1326 = vpop.f32.mrf.mxu0
        %v1327 = vpop.f32.mrf.mxu0
        %v1328 = vpop.f32.mrf.mxu0
        %1329 = vdwg.mxu0
        %v1331 = vsel %vm1161, %v1325, 0
        %1333 = vmatprep.subr.mxu0 0.0
        %1334 = vmatpush1.msra.mxu0 0.0
        %1335 = vmatprep.subr.mxu0 0.0
        %1336 = vmatpush1.msra.mxu0 0.0
        %1337 = vmatprep.subr.mxu0 0.0
        %1338 = vmatpush1.msra.mxu0 0.0
        %1339 = vmatprep.subr.mxu0 0.0
        %1340 = vmatpush1.msra.mxu0 0.0
        %1341 = vmatprep.subr.mxu0 0.0
        %1342 = vmatpush1.msra.mxu0 0.0
        %1343 = vmatprep.subr.mxu0 0.0
        %1344 = vmatpush1.msra.mxu0 0.0
        %1345 = vmatprep.subr.mxu0 0.0
        %1346 = vmatpush1.msra.mxu0 0.0
        %1347 = vmatprep.subr.mxu0 0.0
        %1348 = vmatpush1.msra.mxu0 0.0
        %1349 = vmatprep.subr.mxu0 0.0
        %1350 = vmatpush1.msra.mxu0 0.0
        %1351 = vmatprep.subr.mxu0 0.0
        %1352 = vmatpush1.msra.mxu0 0.0
        %1353 = vmatprep.subr.mxu0 0.0
        %1354 = vmatpush1.msra.mxu0 %v1234
        %1355 = vmatprep.subr.mxu0 0.0
        %1356 = vmatpush1.msra.mxu0 %v1231
        %1357 = vmatprep.subr.mxu0 0.0
        %1358 = vmatpush1.msra.mxu0 %v1226
        %1359 = vmatprep.subr.mxu0 0.0
        %1360 = vmatpush1.msra.mxu0 %v1223
        %1361 = vmatprep.subr.mxu0 0.0
        %1362 = vmatpush1.msra.mxu0 %v1218
        %1363 = vmatprep.subr.mxu0 0.0
        %1364 = vmatpush1.msra.mxu0 %v1215
        %1365 = vmatprep.subr.mxu0 0.0
        %1366 = vmatpush2.msra.mxu0 0.0
        %1367 = vmatprep.subr.mxu0 0.0
        %1368 = vmatpush2.msra.mxu0 0.0
        %1369 = vmatprep.subr.mxu0 0.0
        %1370 = vmatpush2.msra.mxu0 0.0
        %1371 = vmatprep.subr.mxu0 0.0
        %1372 = vmatpush2.msra.mxu0 0.0
        %1373 = vmatprep.subr.mxu0 0.0
        %1374 = vmatpush2.msra.mxu0 0.0
        %1375 = vmatprep.subr.mxu0 0.0
        %1376 = vmatpush2.msra.mxu0 0.0
        %1377 = vmatprep.subr.mxu0 0.0
        %1378 = vmatpush2.msra.mxu0 0.0
        %1379 = vmatprep.subr.mxu0 0.0
        %1380 = vmatpush2.msra.mxu0 0.0
        %1381 = vmatprep.subr.mxu0 0.0
        %1382 = vmatpush2.msra.mxu0 0.0
        %1383 = vmatprep.subr.mxu0 0.0
        %1384 = vmatpush2.msra.mxu0 0.0
        %1385 = vmatprep.subr.mxu0 0.0
        %1386 = vmatpush2.msra.mxu0 0.0
        %1387 = vmatprep.subr.mxu0 0.0
        %1388 = vmatpush2.msra.mxu0 0.0
        %1389 = vmatprep.subr.mxu0 0.0
        %1390 = vmatpush2.msra.mxu0 0.0
        %1391 = vmatprep.subr.mxu0 0.0
        %1392 = vmatpush2.msra.mxu0 0.0
        %1393 = vmatprep.subr.mxu0 0.0
        %1394 = vmatpush2.msra.mxu0 0.0
        %1395 = vmatprep.subr.mxu0 0.0
        %1396 = vmatpush2.msra.mxu0 0.0
        %1397 = vmatprep.mubr.f32.mxu0 0.0
        %1398 = vmatmul.mubr.f32.gmra.mxu0 %v1331
        %v1399 = vpop.f32.mrf.mxu0
        %v1400 = vadd.f32 0.0, %v1399
        %v1401 = vpop.f32.mrf.mxu0
        %1402 = vdwg.mxu0
        %v1403 = vmul.f32 %v1400, 0.14433756
        %v1404 = vsel %vm961, %v1403, -inf
        %1405 = vmax.xlane.f32.xlu0 %v1404
        %v1406 = vpop.xlane.xlu0 %1405
        %v1407 = vsub.f32 %v1403, %v1406
        %v1408 = vmul.f32 %v1407, 1.442695
        %v1409 = vpow.pop %v1408
        %v1410 = vsel %vm961, %v1409, 0.0
        %1411 = vadd.xlane.f32.xlu0 %v1410
        %v1412 = vpop.xlane.xlu0 %1411
        %v1413 = vrcp.pop %v1412
        %v1414 = vmul.f32 %v1409, %v1413
        %v1416 = vsel %vm961, %v1414, 0
        %v1419 = vsel %vm961, %v1239, 0
        %v1422 = vsel %vm961, %v1242, 0
        %v1425 = vsel %vm961, %v1247, 0
        %v1428 = vsel %vm961, %v1250, 0
        %v1431 = vsel %vm961, %v1255, 0
        %v1434 = vsel %vm961, %v1258, 0
        %1436 = vmatprep.subr.mxu0 0.0
        %1437 = vmatpush1.xpose.msra.mxu0 0.0
        %1438 = vmatprep.subr.mxu0 0.0
        %1439 = vmatpush1.xpose.msra.mxu0 0.0
        %1440 = vmatprep.subr.mxu0 0.0
        %1441 = vmatpush1.xpose.msra.mxu0 0.0
        %1442 = vmatprep.subr.mxu0 0.0
        %1443 = vmatpush1.xpose.msra.mxu0 0.0
        %1444 = vmatprep.subr.mxu0 0.0
        %1445 = vmatpush1.xpose.msra.mxu0 0.0
        %1446 = vmatprep.subr.mxu0 0.0
        %1447 = vmatpush1.xpose.msra.mxu0 0.0
        %1448 = vmatprep.subr.mxu0 0.0
        %1449 = vmatpush1.xpose.msra.mxu0 0.0
        %1450 = vmatprep.subr.mxu0 0.0
        %1451 = vmatpush1.xpose.msra.mxu0 0.0
        %1452 = vmatprep.subr.mxu0 0.0
        %1453 = vmatpush1.xpose.msra.mxu0 0.0
        %1454 = vmatprep.subr.mxu0 0.0
        %1455 = vmatpush1.xpose.msra.mxu0 0.0
        %1456 = vmatprep.subr.mxu0 0.0
        %1457 = vmatpush1.xpose.msra.mxu0 %v1434
        %1458 = vmatprep.subr.mxu0 0.0
        %1459 = vmatpush1.xpose.msra.mxu0 %v1431
        %1460 = vmatprep.subr.mxu0 0.0
        %1461 = vmatpush1.xpose.msra.mxu0 %v1428
        %1462 = vmatprep.subr.mxu0 0.0
        %1463 = vmatpush1.xpose.msra.mxu0 %v1425
        %1464 = vmatprep.subr.mxu0 0.0
        %1465 = vmatpush1.xpose.msra.mxu0 %v1422
        %1466 = vmatprep.subr.mxu0 0.0
        %1467 = vmatpush1.xpose.msra.mxu0 %v1419
        %1468 = vmatprep.subr.mxu0 0.0
        %1469 = vmatpush2.xpose.msra.mxu0 0.0
        %1470 = vmatprep.subr.mxu0 0.0
        %1471 = vmatpush2.xpose.msra.mxu0 0.0
        %1472 = vmatprep.subr.mxu0 0.0
        %1473 = vmatpush2.xpose.msra.mxu0 0.0
        %1474 = vmatprep.subr.mxu0 0.0
        %1475 = vmatpush2.xpose.msra.mxu0 0.0
        %1476 = vmatprep.subr.mxu0 0.0
        %1477 = vmatpush2.xpose.msra.mxu0 0.0
        %1478 = vmatprep.subr.mxu0 0.0
        %1479 = vmatpush2.xpose.msra.mxu0 0.0
        %1480 = vmatprep.subr.mxu0 0.0
        %1481 = vmatpush2.xpose.msra.mxu0 0.0
        %1482 = vmatprep.subr.mxu0 0.0
        %1483 = vmatpush2.xpose.msra.mxu0 0.0
        %1484 = vmatprep.subr.mxu0 0.0
        %1485 = vmatpush2.xpose.msra.mxu0 0.0
        %1486 = vmatprep.subr.mxu0 0.0
        %1487 = vmatpush2.xpose.msra.mxu0 0.0
        %1488 = vmatprep.subr.mxu0 0.0
        %1489 = vmatpush2.xpose.msra.mxu0 0.0
        %1490 = vmatprep.subr.mxu0 0.0
        %1491 = vmatpush2.xpose.msra.mxu0 0.0
        %1492 = vmatprep.subr.mxu0 0.0
        %1493 = vmatpush2.xpose.msra.mxu0 0.0
        %1494 = vmatprep.subr.mxu0 0.0
        %1495 = vmatpush2.xpose.msra.mxu0 0.0
        %1496 = vmatprep.subr.mxu0 0.0
        %1497 = vmatpush2.xpose.msra.mxu0 0.0
        %1498 = vmatprep.subr.mxu0 0.0
        %1499 = vmatpush2.xpose.msra.mxu0 0.0
        %1500 = vmatprep.mubr.f32.mxu0 0.0
        %1501 = vmatmul.mubr.f32.gmra.mxu0 %v1416
        %v1502 = vpop.f32.mrf.mxu0
        %v1503 = vadd.f32 0.0, %v1502
        %v1504 = vpop.f32.mrf.mxu0
        %1505 = vdwg.mxu0
        %v1506 = vld [vmem:[%s8] sm:$0xff]
        %v1507 = vld [vmem:[%s8 + $0x8] sm:$0xff]
        %v1508 = vld [vmem:[%s8 + $0x10] sm:$0xff]
        %v1509 = vld [vmem:[%s8 + $0x18] sm:$0xff]
        %v1510 = vld [vmem:[%s8 + $0x20] sm:$0xff]
        %v1511 = vld [vmem:[%s8 + $0x28] sm:$0xff]
        %v1512 = vld [vmem:[%s9] sm:$0x1]
        %v1514 = vlaneseq
        %v1515 = vshrl.u32 %v1514, 7
        %v1516 = vsub.s32 0, %v1515
        %v1517 = vrot.slane %v1512, %v1516
        %v1520 = vsel %vm1161, %v1503, 0
        %1522 = vmatprep.subr.mxu0 0.0
        %1523 = vmatpush1.msra.mxu0 0.0
        %1524 = vmatprep.subr.mxu0 0.0
        %1525 = vmatpush1.msra.mxu0 0.0
        %1526 = vmatprep.subr.mxu0 0.0
        %1527 = vmatpush1.msra.mxu0 0.0
        %1528 = vmatprep.subr.mxu0 0.0
        %1529 = vmatpush1.msra.mxu0 0.0
        %1530 = vmatprep.subr.mxu0 0.0
        %1531 = vmatpush1.msra.mxu0 0.0
        %1532 = vmatprep.subr.mxu0 0.0
        %1533 = vmatpush1.msra.mxu0 0.0
        %1534 = vmatprep.subr.mxu0 0.0
        %1535 = vmatpush1.msra.mxu0 0.0
        %1536 = vmatprep.subr.mxu0 0.0
        %1537 = vmatpush1.msra.mxu0 0.0
        %1538 = vmatprep.subr.mxu0 0.0
        %1539 = vmatpush1.msra.mxu0 0.0
        %1540 = vmatprep.subr.mxu0 0.0
        %1541 = vmatpush1.msra.mxu0 0.0
        %1542 = vmatprep.subr.mxu0 0.0
        %1543 = vmatpush1.msra.mxu0 %v1511
        %1544 = vmatprep.subr.mxu0 0.0
        %1545 = vmatpush1.msra.mxu0 %v1510
        %1546 = vmatprep.subr.mxu0 0.0
        %1547 = vmatpush1.msra.mxu0 %v1509
        %1548 = vmatprep.subr.mxu0 0.0
        %1549 = vmatpush1.msra.mxu0 %v1508
        %1550 = vmatprep.subr.mxu0 0.0
        %1551 = vmatpush1.msra.mxu0 %v1507
        %1552 = vmatprep.subr.mxu0 0.0
        %1553 = vmatpush1.msra.mxu0 %v1506
        %1554 = vmatprep.subr.mxu0 0.0
        %1555 = vmatpush2.msra.mxu0 0.0
        %1556 = vmatprep.subr.mxu0 0.0
        %1557 = vmatpush2.msra.mxu0 0.0
        %1558 = vmatprep.subr.mxu0 0.0
        %1559 = vmatpush2.msra.mxu0 0.0
        %1560 = vmatprep.subr.mxu0 0.0
        %1561 = vmatpush2.msra.mxu0 0.0
        %1562 = vmatprep.subr.mxu0 0.0
        %1563 = vmatpush2.msra.mxu0 0.0
        %1564 = vmatprep.subr.mxu0 0.0
        %1565 = vmatpush2.msra.mxu0 0.0
        %1566 = vmatprep.subr.mxu0 0.0
        %1567 = vmatpush2.msra.mxu0 0.0
        %1568 = vmatprep.subr.mxu0 0.0
        %1569 = vmatpush2.msra.mxu0 0.0
        %1570 = vmatprep.subr.mxu0 0.0
        %1571 = vmatpush2.msra.mxu0 0.0
        %1572 = vmatprep.subr.mxu0 0.0
        %1573 = vmatpush2.msra.mxu0 0.0
        %1574 = vmatprep.subr.mxu0 0.0
        %1575 = vmatpush2.msra.mxu0 0.0
        %1576 = vmatprep.subr.mxu0 0.0
        %1577 = vmatpush2.msra.mxu0 0.0
        %1578 = vmatprep.subr.mxu0 0.0
        %1579 = vmatpush2.msra.mxu0 0.0
        %1580 = vmatprep.subr.mxu0 0.0
        %1581 = vmatpush2.msra.mxu0 0.0
        %1582 = vmatprep.subr.mxu0 0.0
        %1583 = vmatpush2.msra.mxu0 0.0
        %1584 = vmatprep.subr.mxu0 0.0
        %1585 = vmatpush2.msra.mxu0 0.0
        %1586 = vmatprep.mubr.f32.mxu0 0.0
        %1587 = vmatmul.mubr.f32.gmra.mxu0 %v1520
        %v1588 = vpop.f32.mrf.mxu0
        %v1589 = vadd.f32 %v1517, %v1588
        %v1590 = vpop.f32.mrf.mxu0
        %1591 = vdwg.mxu0
        %v1592 = vmax.f32 %v1589, 0.0
        %v1593 = vld [vmem:[%s10] sm:$0xff]
        %v1594 = vld [vmem:[%s10 + $0x8] sm:$0xff]
        %v1595 = vld [vmem:[%s10 + $0x10] sm:$0xff]
        %v1596 = vld [vmem:[%s10 + $0x18] sm:$0xff]
        %v1597 = vld [vmem:[%s10 + $0x20] sm:$0xff]
        %v1598 = vld [vmem:[%s10 + $0x28] sm:$0xff]
        %v1599 = vld [vmem:[%s10 + $0x30] sm:$0xff]
        %v1600 = vld [vmem:[%s10 + $0x38] sm:$0xff]
        %v1601 = vld [vmem:[%s11] sm:$0x1]
        %v1603 = vlaneseq
        %v1604 = vshrl.u32 %v1603, 7
        %v1605 = vsub.s32 0, %v1604
        %v1606 = vrot.slane %v1601, %v1605
        %v1609 = vsel %vm961, %v1592, 0
        %1611 = vmatprep.subr.mxu0 0.0
        %1612 = vmatpush1.msra.mxu0 0.0
        %1613 = vmatprep.subr.mxu0 0.0
        %1614 = vmatpush1.msra.mxu0 0.0
        %1615 = vmatprep.subr.mxu0 0.0
        %1616 = vmatpush1.msra.mxu0 0.0
        %1617 = vmatprep.subr.mxu0 0.0
        %1618 = vmatpush1.msra.mxu0 0.0
        %1619 = vmatprep.subr.mxu0 0.0
        %1620 = vmatpush1.msra.mxu0 0.0
        %1621 = vmatprep.subr.mxu0 0.0
        %1622 = vmatpush1.msra.mxu0 0.0
        %1623 = vmatprep.subr.mxu0 0.0
        %1624 = vmatpush1.msra.mxu0 0.0
        %1625 = vmatprep.subr.mxu0 0.0
        %1626 = vmatpush1.msra.mxu0 0.0
        %1627 = vmatprep.subr.mxu0 0.0
        %1628 = vmatpush1.msra.mxu0 %v1600
        %1629 = vmatprep.subr.mxu0 0.0
        %1630 = vmatpush1.msra.mxu0 %v1599
        %1631 = vmatprep.subr.mxu0 0.0
        %1632 = vmatpush1.msra.mxu0 %v1598
        %1633 = vmatprep.subr.mxu0 0.0
        %1634 = vmatpush1.msra.mxu0 %v1597
        %1635 = vmatprep.subr.mxu0 0.0
        %1636 = vmatpush1.msra.mxu0 %v1596
        %1637 = vmatprep.subr.mxu0 0.0
        %1638 = vmatpush1.msra.mxu0 %v1595
        %1639 = vmatprep.subr.mxu0 0.0
        %1640 = vmatpush1.msra.mxu0 %v1594
        %1641 = vmatprep.subr.mxu0 0.0
        %1642 = vmatpush1.msra.mxu0 %v1593
        %1643 = vmatprep.subr.mxu0 0.0
        %1644 = vmatpush2.msra.mxu0 0.0
        %1645 = vmatprep.subr.mxu0 0.0
        %1646 = vmatpush2.msra.mxu0 0.0
        %1647 = vmatprep.subr.mxu0 0.0
        %1648 = vmatpush2.msra.mxu0 0.0
        %1649 = vmatprep.subr.mxu0 0.0
        %1650 = vmatpush2.msra.mxu0 0.0
        %1651 = vmatprep.subr.mxu0 0.0
        %1652 = vmatpush2.msra.mxu0 0.0
        %1653 = vmatprep.subr.mxu0 0.0
        %1654 = vmatpush2.msra.mxu0 0.0
        %1655 = vmatprep.subr.mxu0 0.0
        %1656 = vmatpush2.msra.mxu0 0.0
        %1657 = vmatprep.subr.mxu0 0.0
        %1658 = vmatpush2.msra.mxu0 0.0
        %1659 = vmatprep.subr.mxu0 0.0
        %1660 = vmatpush2.msra.mxu0 0.0
        %1661 = vmatprep.subr.mxu0 0.0
        %1662 = vmatpush2.msra.mxu0 0.0
        %1663 = vmatprep.subr.mxu0 0.0
        %1664 = vmatpush2.msra.mxu0 0.0
        %1665 = vmatprep.subr.mxu0 0.0
        %1666 = vmatpush2.msra.mxu0 0.0
        %1667 = vmatprep.subr.mxu0 0.0
        %1668 = vmatpush2.msra.mxu0 0.0
        %1669 = vmatprep.subr.mxu0 0.0
        %1670 = vmatpush2.msra.mxu0 0.0
        %1671 = vmatprep.subr.mxu0 0.0
        %1672 = vmatpush2.msra.mxu0 0.0
        %1673 = vmatprep.subr.mxu0 0.0
        %1674 = vmatpush2.msra.mxu0 0.0
        %1675 = vmatprep.mubr.f32.mxu0 0.0
        %1676 = vmatmul.mubr.f32.gmra.mxu0 %v1609
        %v1677 = vpop.f32.mrf.mxu0
        %v1678 = vadd.f32 %v1606, %v1677
        %v1679 = vpop.f32.mrf.mxu0
        %1680 = vdwg.mxu0
        %1681 = vmax.xlane.f32.xlu0 %v1678
        %v1682 = vpop.xlane.xlu0 %1681
        %v1683 = vsub.f32 %v1678, %v1682
        %v1684 = vmul.f32 %v1683, 1.442695
        %v1685 = vpow.pop %v1684
        %1686 = vadd.xlane.f32.xlu0 %v1685
        %v1687 = vpop.xlane.xlu0 %1686
        %v1688 = vrcp.pop %v1687
        %v1689 = vmul.f32 %v1685, %v1688
        %1690 = vst [vmem:[%s464] sm:$0xff] %v1678
        %1691 = vst.msk [vmem:[%s471] sm:$0xff] %vm961, %v1414
        %1692 = vst [vmem:[%s478] sm:$0xff] %v1689
        %s1693 = sand.u32 %s297, 1
        %s1694 = scalar_lea.sflag [#allocation3], %s1693
        %s1695 = sand.u32 %s297, 1
        %s1696 = smul.addr %s1695, 8
        %s1697 = scalar_lea.vmem [#allocation2], %s1696
        %s1698 = sand.u32 %s32, 1
        %s1699 = scalar_lea.sflag [#allocation5], %s1698
        %s1700 = sand.u32 %s323, 1
        %s1701 = smul.addr %s1700, 8
        %s1702 = scalar_lea.vmem [#allocation4], %s1701
        %s1703 = sand.u32 %s32, 1
        %s1704 = scalar_lea.sflag [#allocation5], %s1703
        %s1705 = sand.u32 %s349, 1
        %s1706 = smul.addr %s1705, 8
        %s1707 = scalar_lea.vmem [#allocation6], %s1706
        // Predicated region
        $region69: #{tpu_custom_call.1} parent=67 // pred_check
          %p1708 = pneg %p307
        $region70: #{tpu_custom_call.1} parent=67 // pred_check_branch
          %1710 = sbr.rel (%p1708) target = $region72
        $region71: #{tpu_custom_call.1} parent=67 // pred_region
          %s1712 = ssub.s32 128, 128
          %1713 = vsyncadd %s1694, %s1712
          %s1714 = smul.addr %s32, 128
          %s1715 = scalar_lea.hbm %s12, %s1714
          %s1717 = sshll.u32 %s1697, 4
          %s1718 = int_to_ptr.vmem [resolvable:$true] %s1717
          %1720 = dma.vmem_to_hbm [thread:$0]  %s1718, 128, %s1715, %s1694
        $region72: #{tpu_custom_call.1} parent=67 // pred_fallthru
          _
        // Predicated region
        $region73: #{tpu_custom_call.1} parent=67 // pred_check
          %p1721 = pneg %p333
        $region74: #{tpu_custom_call.1} parent=67 // pred_check_branch
          %1723 = sbr.rel (%p1721) target = $region76
        $region75: #{tpu_custom_call.1} parent=67 // pred_region
          %s1725 = ssub.s32 128, 128
          %1726 = vsyncadd %s1699, %s1725
          %s1727 = smul.addr %s32, 128
          %s1728 = scalar_lea.hbm %s13, %s1727
          %s1730 = sshll.u32 %s1702, 4
          %s1731 = int_to_ptr.vmem [resolvable:$true] %s1730
          %1733 = dma.vmem_to_hbm [thread:$0]  %s1731, 128, %s1728, %s1699
        $region76: #{tpu_custom_call.1} parent=67 // pred_fallthru
          _
        // Predicated region
        $region77: #{tpu_custom_call.1} parent=67 // pred_check
          %p1734 = pneg %p359
        $region78: #{tpu_custom_call.1} parent=67 // pred_check_branch
          %1736 = sbr.rel (%p1734) target = $region80
        $region79: #{tpu_custom_call.1} parent=67 // pred_region
          %s1738 = ssub.s32 128, 128
          %1739 = vsyncadd %s1704, %s1738
          %s1740 = smul.addr %s32, 128
          %s1741 = scalar_lea.hbm %s14, %s1740
          %s1743 = sshll.u32 %s1707, 4
          %s1744 = int_to_ptr.vmem [resolvable:$true] %s1743
          %1746 = dma.vmem_to_hbm [thread:$0]  %s1744, 128, %s1741, %s1704
        $region80: #{tpu_custom_call.1} parent=67 // pred_fallthru
          _
      $region68: #{tpu_custom_call.1} parent=5 // pred_fallthru
        _
      %p1747 = scmp.le.s32.totalorder 2, %s27
      // Predicated region
      $region81: #{tpu_custom_call.1} parent=5 // pred_check
        %p1748 = pneg %p1747
      $region82: #{tpu_custom_call.1} parent=5 // pred_check_branch
        %1750 = sbr.rel (%p1748) target = $region84
      $region83: #{tpu_custom_call.1} parent=5 // pred_region
        %s1751 = ssub.s32 %s27, 2
        // Predicated region
        $region85: #{tpu_custom_call.1} parent=83 // pred_check
          %p1752 = pneg %p313
        $region86: #{tpu_custom_call.1} parent=83 // pred_check_branch
          %1754 = sbr.rel (%p1752) target = $region88
        $region87: #{tpu_custom_call.1} parent=83 // pred_region
          %s1755 = sand.u32 %s298, 1
          %s1756 = scalar_lea.sflag [#allocation3], %s1755
          %s1757 = sand.u32 %s298, 1
          %s1758 = smul.addr %s1757, 8
          %s1759 = scalar_lea.vmem [#allocation2], %s1758
          %1760 = dma.done %s1756, 128
        $region88: #{tpu_custom_call.1} parent=83 // pred_fallthru
          _
        // Predicated region
        $region89: #{tpu_custom_call.1} parent=83 // pred_check
          %p1761 = pneg %p339
        $region90: #{tpu_custom_call.1} parent=83 // pred_check_branch
          %1763 = sbr.rel (%p1761) target = $region92
        $region91: #{tpu_custom_call.1} parent=83 // pred_region
          %s1764 = sand.u32 %s33, 1
          %s1765 = scalar_lea.sflag [#allocation5], %s1764
          %s1766 = sand.u32 %s324, 1
          %s1767 = smul.addr %s1766, 8
          %s1768 = scalar_lea.vmem [#allocation4], %s1767
          %1769 = dma.done %s1765, 128
        $region92: #{tpu_custom_call.1} parent=83 // pred_fallthru
          _
        // Predicated region
        $region93: #{tpu_custom_call.1} parent=83 // pred_check
          %p1770 = pneg %p365
        $region94: #{tpu_custom_call.1} parent=83 // pred_check_branch
          %1772 = sbr.rel (%p1770) target = $region96
        $region95: #{tpu_custom_call.1} parent=83 // pred_region
          %s1773 = sand.u32 %s33, 1
          %s1774 = scalar_lea.sflag [#allocation5], %s1773
          %s1775 = sand.u32 %s350, 1
          %s1776 = smul.addr %s1775, 8
          %s1777 = scalar_lea.vmem [#allocation6], %s1776
          %1778 = dma.done %s1774, 128
        $region96: #{tpu_custom_call.1} parent=83 // pred_fallthru
          _
      $region84: #{tpu_custom_call.1} parent=5 // pred_fallthru
        _
    $region6: #{tpu_custom_call.1} parent=1 // loop_footer
      %s31 = sadd.s32 1, %s27
    $region7: #{tpu_custom_call.1} parent=1 // loop_footer_branch
      %26 = sbr.rel target = $region3
    $region8: #{tpu_custom_call.1} parent=1 // loop_exit
      _
    %1779 = vsyncpa [#allocation3], 1
    %s1780 = scalar_lea.sflag [#allocation3], 1
    %1781 = vsyncpa %s1780, 1
    %1782 = vsyncpa [#allocation5], 1
    %s1783 = scalar_lea.sflag [#allocation5], 1
    %1784 = vsyncpa %s1783, 1

</llo_original>
